<compile_context>
chip_gen: v7x
topology: tpu7x:2x2x1
jax: 0.10.0
libtpu: 0.0.40
codegen_flags: <defaults>
</compile_context>

<pallas_src>
import jax
import jax.numpy as jnp
from jax.experimental import pallas as pl
from jax.experimental.pallas import tpu as pltpu

R_ON = 0.05      # phased-LSTM open ratio
LEAK = 1e-3      # phased-LSTM leak
LN_EPS = 1e-5    # nn.LayerNorm default eps


def _round_up(x, m):
    return ((x + m - 1) // m) * m


def _cdiv(a, b):
    return (a + b - 1) // b


def _pick_batch_tile(b):
    """Batch tile: fill the MXU M-dim, but keep >=2 tiles when possible so the
    'parallel' batch grid axis can be split across v7x TensorCores."""
    bp8 = _round_up(b, 8)
    if bp8 <= 8:
        return bp8
    if bp8 >= 256:
        return 128
    return min(128, _round_up(_cdiv(bp8, 2), 8))


def _padded_block_bytes(shape, dtype):
    """Conservative physical VMEM footprint of one block (sublane/lane pad)."""
    s = [int(d) for d in shape]
    if len(s) >= 2:
        s[-2] = _round_up(s[-2], 8)
    s[-1] = _round_up(s[-1], 128)
    n = 1
    for d in s:
        n *= d
    return n * jnp.dtype(dtype).itemsize


# ---------------------------------------------------------------------------
# Fused kernel: PLSTM recurrence (h @ U only; Wx + b precomputed and streamed)
# -> LayerNorm -> fc1 -> fc2.  Grid = (batch tiles "parallel",
# time chunks "arbitrary"); h/c live in VMEM scratch across time chunks.
# ---------------------------------------------------------------------------
def make_fused_kernel(h_units):
    H = h_units

    def kernel(wxb_ref, k_ref, u_ref, gamma_ref, beta_ref,
               w1_ref, b1_ref, w2_ref, b2_ref, out_ref, h_scr, c_scr):
        tc = pl.program_id(1)

        @pl.when(tc == 0)
        def _():
            h_scr[...] = jnp.zeros_like(h_scr)
            c_scr[...] = jnp.zeros_like(c_scr)

        n_steps = wxb_ref.shape[0]           # static time-chunk length

        def step(t, carry):
            h, c = carry
            # Packed gates (BT, 4H): precomputed bf16 Wx_t + b (upcast to f32)
            # plus recurrent h @ U on the MXU (bf16 operands, f32 accumulate).
            gates = wxb_ref[t].astype(jnp.float32) + jnp.dot(
                h.astype(u_ref.dtype), u_ref[...],
                preferred_element_type=jnp.float32)
            i = jax.nn.sigmoid(gates[:, 0 * H:1 * H])
            f = jax.nn.sigmoid(gates[:, 1 * H:2 * H])
            g = jnp.tanh(gates[:, 2 * H:3 * H])
            o = jax.nn.sigmoid(gates[:, 3 * H:4 * H])
            c_t = f * c + i * g
            h_t = o * jnp.tanh(c_t)
            k = k_ref[t]                      # (1, H) precomputed time gate
            # Fused phased mix: x + k*(x~ - x)  (drops the (1-k) term).
            c = c + k * (c_t - c)
            h = h + k * (h_t - h)
            return h, c

        # Partial unroll: keeps LLO visibility without blowing vreg live ranges.
        h, c = jax.lax.fori_loop(0, n_steps, step,
                                 (h_scr[...], c_scr[...]),
                                 unroll=min(int(n_steps), 8))
        h_scr[...] = h
        c_scr[...] = c

        @pl.when(tc == pl.num_programs(1) - 1)
        def _():
            # LayerNorm over the exact H lanes (logical shape, no masking).
            mean = jnp.mean(h, axis=-1, keepdims=True)
            d = h - mean
            var = jnp.mean(d * d, axis=-1, keepdims=True)
            y = d * jax.lax.rsqrt(var + LN_EPS) * gamma_ref[...] + beta_ref[...]
            # dropout1 / dropout2 are identity in eval mode.
            # fc1 on the MXU (bf16 operands, f32 accumulate).
            z = jnp.dot(y.astype(w1_ref.dtype), w1_ref[...],
                        preferred_element_type=jnp.float32) + b1_ref[...]
            # fc2 has N=1 -> VPU multiply + lane reduce instead of an MXU matmul.
            out = jnp.sum(z * w2_ref[...], axis=-1, keepdims=True) + b2_ref[...]
            out_ref[...] = out.astype(out_ref.dtype)

    return kernel


# ---------------------------------------------------------------------------
# Model wrapper: hoisted input projection (one big matmul), packed bf16 wxb
# stream, precomputed k(t) table, batch/time tiling, pallas_call.
# ---------------------------------------------------------------------------
def phased_lstm_forward(x, params, *, matmul_dtype=jnp.bfloat16):
    B, T, F = x.shape
    H = params["U"].shape[0]
    D = params["w1"].shape[1]
    G = 4 * H
    GP = _round_up(G, 128)          # packed gate lanes (== 4H when H == 32)

    BT = _pick_batch_tile(B)
    BP = BT * _cdiv(_round_up(B, 8), BT)

    # Time chunking: keep each bf16 wxb slab <= ~2 MiB (double-buffered <= 4).
    step_bytes = BT * GP * 2
    TC = max(1, min(T, 32, (2 * 1024 * 1024) // max(step_bytes, 1)))
    TP = TC * _cdiv(T, TC)

    x = x.astype(jnp.float32)

    # Hoisted input projection + merged bias: one large matmul for all T,
    # produced directly time-major and packed to 4H lanes; streamed in bf16
    # (upcast inside the kernel; gate sums stay f32).
    wxb = jnp.einsum("btf,fg->tbg", x, params["W"]) + params["b"]   # (T,B,4H)
    wxb = jnp.pad(wxb, ((0, TP - T), (0, BP - B), (0, GP - G)))
    wxb = wxb.astype(matmul_dtype)

    # Precomputed phased time gate k(t); padded time steps get k = 0, which
    # freezes h/c (a no-op step), so any T is handled without masking.
    # TODO(synk): uses the integer sequence index as the timestamp.
    t_idx = jnp.arange(T, dtype=jnp.float32)[:, None]               # (T,1)
    phi = jnp.mod(t_idx - params["shift"], params["tau"]) / params["tau"]
    k = jnp.where(phi < 0.5 * R_ON, 2.0 * phi / R_ON,
                  jnp.where(phi < R_ON, 2.0 - 2.0 * phi / R_ON, LEAK * phi))
    k = jnp.pad(k, ((0, TP - T), (0, 0)))[:, None, :]               # (TP,1,H)

    # Packed recurrent weight; zero-padded gate lanes stay inert.
    U = jnp.pad(params["U"], ((0, 0), (0, GP - G))).astype(matmul_dtype)
    gamma, beta = params["gamma"], params["beta"]
    w1 = params["w1"].astype(matmul_dtype)
    b1 = params["b1"]
    w2 = params["w2"].reshape(1, D)
    b2 = params["b2"].reshape(1, 1)

    # vmem_limit derived from the actual double-buffered block sizes
    # (floor 32 MiB; cap below v7x's 64 MiB/TC physical VMEM).
    blocks = (_padded_block_bytes((TC, BT, GP), matmul_dtype)
              + _padded_block_bytes((TC, 1, H), jnp.float32)
              + _padded_block_bytes((H, GP), matmul_dtype)
              + 2 * _padded_block_bytes((1, H), jnp.float32)
              + _padded_block_bytes((H, D), matmul_dtype)
              + 2 * _padded_block_bytes((1, D), jnp.float32)
              + _padded_block_bytes((1, 1), jnp.float32)
              + _padded_block_bytes((BT, 1), jnp.float32))
    scratch_bytes = 2 * _padded_block_bytes((BT, H), jnp.float32)
    vmem_limit = int(min(60 * 2**20, max(32 * 2**20, 3 * blocks + scratch_bytes)))

    kernel = make_fused_kernel(H)
    out = pl.pallas_call(
        kernel,
        out_shape=jax.ShapeDtypeStruct((BP, 1), jnp.float32),
        grid_spec=pltpu.PrefetchScalarGridSpec(
            num_scalar_prefetch=0,
            grid=(BP // BT, TP // TC),    # (batch tiles, time chunks)
            in_specs=[
                pl.BlockSpec((TC, BT, GP), lambda b, t: (t, b, 0)),  # Wx+b (bf16)
                pl.BlockSpec((TC, 1, H), lambda b, t: (t, 0, 0)),    # k(t) table
                pl.BlockSpec((H, GP), lambda b, t: (0, 0)),          # U (bf16)
                pl.BlockSpec((1, H), lambda b, t: (0, 0)),           # gamma
                pl.BlockSpec((1, H), lambda b, t: (0, 0)),           # beta
                pl.BlockSpec((H, D), lambda b, t: (0, 0)),           # w1 (bf16)
                pl.BlockSpec((1, D), lambda b, t: (0, 0)),           # b1
                pl.BlockSpec((1, D), lambda b, t: (0, 0)),           # w2 (row)
                pl.BlockSpec((1, 1), lambda b, t: (0, 0)),           # b2
            ],
            out_specs=pl.BlockSpec((BT, 1), lambda b, t: (b, 0)),
            scratch_shapes=[pltpu.VMEM((BT, H), jnp.float32),        # h carry
                            pltpu.VMEM((BT, H), jnp.float32)],       # c carry
        ),
        compiler_params=pltpu.CompilerParams(
            dimension_semantics=("parallel", "arbitrary"),
            vmem_limit_bytes=vmem_limit,
        ),
    )(wxb, k, U, gamma, beta, w1, b1, w2, b2)
    return out[:B]


# ---------------------------------------------------------------------------
# Parameter init (gate order i,f,g,o; bias_ih + bias_hh merged into b).
# ---------------------------------------------------------------------------
def init_params(key, input_size, lstm_units, dense_units):
    H = lstm_units
    ks = jax.random.split(key, 8)
    scale = 1.0 / jnp.sqrt(jnp.float32(H))
    W = jax.random.uniform(ks[0], (input_size, 4 * H), jnp.float32, -scale, scale)
    U = jax.random.uniform(ks[1], (H, 4 * H), jnp.float32, -scale, scale)
    b = jax.random.uniform(ks[2], (1, 4 * H), jnp.float32, -scale, scale)
    tau = jnp.exp(jax.random.uniform(ks[3], (1, H), jnp.float32, 1.0, 3.0))
    shift = jax.random.uniform(ks[4], (1, H), jnp.float32, 0.0, 1.0) * tau
    gamma = jnp.ones((1, H), jnp.float32)
    beta = jnp.zeros((1, H), jnp.float32)
    s1 = 1.0 / jnp.sqrt(jnp.float32(H))
    w1 = jax.random.uniform(ks[5], (H, dense_units), jnp.float32, -s1, s1)
    b1 = jax.random.uniform(ks[6], (1, dense_units), jnp.float32, -s1, s1)
    s2 = 1.0 / jnp.sqrt(jnp.float32(dense_units))
    w2 = jax.random.uniform(ks[7], (dense_units, 1), jnp.float32, -s2, s2)
    b2 = jnp.zeros((1, 1), jnp.float32)
    return dict(W=W, U=U, b=b, tau=tau, shift=shift, gamma=gamma, beta=beta,
                w1=w1, b1=b1, w2=w2, b2=b2)


if __name__ == "__main__":
    B, T, F = 2, 8, 4          # batch, seq, input_size
    lstm_units, dense_units = 32, 16

    key = jax.random.PRNGKey(0)
    k_x, k_p = jax.random.split(key)
    x = jax.random.normal(k_x, (B, T, F), jnp.float32)
    params = init_params(k_p, F, lstm_units, dense_units)

    out = jax.jit(phased_lstm_forward)(x, params)
    out = jax.block_until_ready(out)
    assert out.shape == (B, 1), out.shape
    assert bool(jnp.all(jnp.isfinite(out)))
    print("KERNEL_OK")
</pallas_src>

<mosaic_0001>
module attributes {stable_mosaic.version = 11 : i64} {
  func.func @kernel(%arg0: i32, %arg1: i32, %arg2: memref<8x8x128xbf16, #tpu.memory_space<vmem>>, %arg3: memref<8x1x32xf32, #tpu.memory_space<vmem>>, %arg4: memref<32x128xbf16, #tpu.memory_space<vmem>>, %arg5: memref<1x32xf32, #tpu.memory_space<vmem>>, %arg6: memref<1x32xf32, #tpu.memory_space<vmem>>, %arg7: memref<32x16xbf16, #tpu.memory_space<vmem>>, %arg8: memref<1x16xf32, #tpu.memory_space<vmem>>, %arg9: memref<1x16xf32, #tpu.memory_space<vmem>>, %arg10: memref<1x1xf32, #tpu.memory_space<vmem>>, %arg11: memref<8x1xf32, #tpu.memory_space<vmem>>, %arg12: memref<8x32xf32, #tpu.memory_space<vmem>>, %arg13: memref<8x32xf32, #tpu.memory_space<vmem>>) attributes {dimension_semantics = [#tpu.dimension_semantics<parallel>, #tpu.dimension_semantics<arbitrary>], iteration_bounds = array<i64: 1, 1>, scalar_prefetch = 0 : i64, scratch_operands = 2 : i64, tpu.core_type = #tpu.core_type<tc>, window_params = [{transform_indices = @transform_0, window_bounds = array<i64: 8, 8, 128>}, {transform_indices = @transform_1, window_bounds = array<i64: 8, 1, 32>}, {pipeline_mode = #tpu.pipeline_mode<synchronous>, transform_indices = @transform_2, window_bounds = array<i64: 32, 128>}, {pipeline_mode = #tpu.pipeline_mode<synchronous>, transform_indices = @transform_3, window_bounds = array<i64: 1, 32>}, {pipeline_mode = #tpu.pipeline_mode<synchronous>, transform_indices = @transform_4, window_bounds = array<i64: 1, 32>}, {pipeline_mode = #tpu.pipeline_mode<synchronous>, transform_indices = @transform_5, window_bounds = array<i64: 32, 16>}, {pipeline_mode = #tpu.pipeline_mode<synchronous>, transform_indices = @transform_6, window_bounds = array<i64: 1, 16>}, {pipeline_mode = #tpu.pipeline_mode<synchronous>, transform_indices = @transform_7, window_bounds = array<i64: 1, 16>}, {pipeline_mode = #tpu.pipeline_mode<synchronous>, transform_indices = @transform_8, window_bounds = array<i64: 1, 1>}, {transform_indices = @transform_9, window_bounds = array<i64: 8, 1>}]} {
    %c0_i32 = arith.constant 0 : i32
    %0 = arith.cmpi eq, %arg1, %c0_i32 : i32
    %1 = arith.extui %0 : i1 to i32
    %c0_i32_0 = arith.constant 0 : i32
    %2 = arith.cmpi ne, %1, %c0_i32_0 : i32
    scf.if %2 {
      %cst_90 = arith.constant 0.000000e+00 : f32
      %362 = vector.broadcast %cst_90 : f32 to vector<8x32xf32>
      %c0_91 = arith.constant 0 : index
      %c0_92 = arith.constant 0 : index
      %363 = vector.load %arg12[%c0_91, %c0_92] : memref<8x32xf32, #tpu.memory_space<vmem>>, vector<8x32xf32>
      tpu.vector_store %arg12[%c0_91, %c0_92], %362 {strides = array<i32>} : memref<8x32xf32, #tpu.memory_space<vmem>>, vector<8x32xf32>,
      %cst_93 = arith.constant 0.000000e+00 : f32
      %364 = vector.broadcast %cst_93 : f32 to vector<8x32xf32>
      %c0_94 = arith.constant 0 : index
      %c0_95 = arith.constant 0 : index
      %365 = vector.load %arg13[%c0_94, %c0_95] : memref<8x32xf32, #tpu.memory_space<vmem>>, vector<8x32xf32>
      tpu.vector_store %arg13[%c0_94, %c0_95], %364 {strides = array<i32>} : memref<8x32xf32, #tpu.memory_space<vmem>>, vector<8x32xf32>,
    } else {
    }
    %c0 = arith.constant 0 : index
    %c0_1 = arith.constant 0 : index
    %3 = vector.load %arg12[%c0, %c0_1] : memref<8x32xf32, #tpu.memory_space<vmem>>, vector<8x32xf32>
    %c0_2 = arith.constant 0 : index
    %c0_3 = arith.constant 0 : index
    %4 = vector.load %arg13[%c0_2, %c0_3] : memref<8x32xf32, #tpu.memory_space<vmem>>, vector<8x32xf32>
    %c0_i32_4 = arith.constant 0 : i32
    %5 = arith.index_cast %c0_i32_4 : i32 to index
    %c0_5 = arith.constant 0 : index
    %c0_6 = arith.constant 0 : index
    %6 = vector.load %arg2[%5, %c0_5, %c0_6] : memref<8x8x128xbf16, #tpu.memory_space<vmem>>, vector<1x8x128xbf16>
    %7 = vector.shape_cast %6 : vector<1x8x128xbf16> to vector<8x128xbf16>
    %8 = arith.extf %7 : vector<8x128xbf16> to vector<8x128xf32>
    %9 = arith.truncf %3 : vector<8x32xf32> to vector<8x32xbf16>
    %c0_7 = arith.constant 0 : index
    %c0_8 = arith.constant 0 : index
    %10 = vector.load %arg4[%c0_7, %c0_8] : memref<32x128xbf16, #tpu.memory_space<vmem>>, vector<32x128xbf16>
    %cst = arith.constant dense<0.000000e+00> : vector<8x128xf32>
    %11 = tpu.matmul %9, %10, %cst {dimension_numbers = #tpu.dot_dimension_numbers<[1], [0], [0], [1], [0, 0, 1, 1], [], []>} : vector<8x32xbf16>, vector<32x128xbf16>, vector<8x128xf32> -> vector<8x128xf32>
    %12 = arith.addf %8, %11 : vector<8x128xf32>
    %13 = vector.extract_strided_slice %12 {offsets = [0, 0], sizes = [8, 32], strides = [1, 1]} : vector<8x128xf32> to vector<8x32xf32>
    %14 = arith.negf %13 : vector<8x32xf32>
    %15 = math.exp %14 : vector<8x32xf32>
    %cst_9 = arith.constant 1.000000e+00 : f32
    %16 = vector.broadcast %cst_9 : f32 to vector<8x32xf32>
    %17 = arith.addf %16, %15 : vector<8x32xf32>
    %18 = arith.divf %16, %17 : vector<8x32xf32>
    %19 = vector.extract_strided_slice %12 {offsets = [0, 32], sizes = [8, 32], strides = [1, 1]} : vector<8x128xf32> to vector<8x32xf32>
    %20 = arith.negf %19 : vector<8x32xf32>
    %21 = math.exp %20 : vector<8x32xf32>
    %cst_10 = arith.constant 1.000000e+00 : f32
    %22 = vector.broadcast %cst_10 : f32 to vector<8x32xf32>
    %23 = arith.addf %22, %21 : vector<8x32xf32>
    %24 = arith.divf %22, %23 : vector<8x32xf32>
    %25 = vector.extract_strided_slice %12 {offsets = [0, 64], sizes = [8, 32], strides = [1, 1]} : vector<8x128xf32> to vector<8x32xf32>
    %26 = math.tanh %25 : vector<8x32xf32>
    %27 = vector.extract_strided_slice %12 {offsets = [0, 96], sizes = [8, 32], strides = [1, 1]} : vector<8x128xf32> to vector<8x32xf32>
    %28 = arith.negf %27 : vector<8x32xf32>
    %29 = math.exp %28 : vector<8x32xf32>
    %cst_11 = arith.constant 1.000000e+00 : f32
    %30 = vector.broadcast %cst_11 : f32 to vector<8x32xf32>
    %31 = arith.addf %30, %29 : vector<8x32xf32>
    %32 = arith.divf %30, %31 : vector<8x32xf32>
    %33 = arith.mulf %24, %4 : vector<8x32xf32>
    %34 = arith.mulf %18, %26 : vector<8x32xf32>
    %35 = arith.addf %33, %34 : vector<8x32xf32>
    %36 = math.tanh %35 : vector<8x32xf32>
    %37 = arith.mulf %32, %36 : vector<8x32xf32>
    %38 = arith.index_cast %c0_i32_4 : i32 to index
    %c0_12 = arith.constant 0 : index
    %c0_13 = arith.constant 0 : index
    %39 = vector.load %arg3[%38, %c0_12, %c0_13] : memref<8x1x32xf32, #tpu.memory_space<vmem>>, vector<1x1x32xf32>
    %40 = vector.shape_cast %39 : vector<1x1x32xf32> to vector<1x32xf32>
    %41 = arith.subf %35, %4 : vector<8x32xf32>
    %42 = vector.broadcast %40 : vector<1x32xf32> to vector<8x32xf32>
    %43 = arith.mulf %42, %41 : vector<8x32xf32>
    %44 = arith.addf %4, %43 : vector<8x32xf32>
    %45 = arith.subf %37, %3 : vector<8x32xf32>
    %46 = vector.broadcast %40 : vector<1x32xf32> to vector<8x32xf32>
    %47 = arith.mulf %46, %45 : vector<8x32xf32>
    %48 = arith.addf %3, %47 : vector<8x32xf32>
    %c1_i32 = arith.constant 1 : i32
    %49 = arith.index_cast %c1_i32 : i32 to index
    %c0_14 = arith.constant 0 : index
    %c0_15 = arith.constant 0 : index
    %50 = vector.load %arg2[%49, %c0_14, %c0_15] : memref<8x8x128xbf16, #tpu.memory_space<vmem>>, vector<1x8x128xbf16>
    %51 = vector.shape_cast %50 : vector<1x8x128xbf16> to vector<8x128xbf16>
    %52 = arith.extf %51 : vector<8x128xbf16> to vector<8x128xf32>
    %53 = arith.truncf %48 : vector<8x32xf32> to vector<8x32xbf16>
    %c0_16 = arith.constant 0 : index
    %c0_17 = arith.constant 0 : index
    %54 = vector.load %arg4[%c0_16, %c0_17] : memref<32x128xbf16, #tpu.memory_space<vmem>>, vector<32x128xbf16>
    %cst_18 = arith.constant dense<0.000000e+00> : vector<8x128xf32>
    %55 = tpu.matmul %53, %54, %cst_18 {dimension_numbers = #tpu.dot_dimension_numbers<[1], [0], [0], [1], [0, 0, 1, 1], [], []>} : vector<8x32xbf16>, vector<32x128xbf16>, vector<8x128xf32> -> vector<8x128xf32>
    %56 = arith.addf %52, %55 : vector<8x128xf32>
    %57 = vector.extract_strided_slice %56 {offsets = [0, 0], sizes = [8, 32], strides = [1, 1]} : vector<8x128xf32> to vector<8x32xf32>
    %58 = arith.negf %57 : vector<8x32xf32>
    %59 = math.exp %58 : vector<8x32xf32>
    %cst_19 = arith.constant 1.000000e+00 : f32
    %60 = vector.broadcast %cst_19 : f32 to vector<8x32xf32>
    %61 = arith.addf %60, %59 : vector<8x32xf32>
    %62 = arith.divf %60, %61 : vector<8x32xf32>
    %63 = vector.extract_strided_slice %56 {offsets = [0, 32], sizes = [8, 32], strides = [1, 1]} : vector<8x128xf32> to vector<8x32xf32>
    %64 = arith.negf %63 : vector<8x32xf32>
    %65 = math.exp %64 : vector<8x32xf32>
    %cst_20 = arith.constant 1.000000e+00 : f32
    %66 = vector.broadcast %cst_20 : f32 to vector<8x32xf32>
    %67 = arith.addf %66, %65 : vector<8x32xf32>
    %68 = arith.divf %66, %67 : vector<8x32xf32>
    %69 = vector.extract_strided_slice %56 {offsets = [0, 64], sizes = [8, 32], strides = [1, 1]} : vector<8x128xf32> to vector<8x32xf32>
    %70 = math.tanh %69 : vector<8x32xf32>
    %71 = vector.extract_strided_slice %56 {offsets = [0, 96], sizes = [8, 32], strides = [1, 1]} : vector<8x128xf32> to vector<8x32xf32>
    %72 = arith.negf %71 : vector<8x32xf32>
    %73 = math.exp %72 : vector<8x32xf32>
    %cst_21 = arith.constant 1.000000e+00 : f32
    %74 = vector.broadcast %cst_21 : f32 to vector<8x32xf32>
    %75 = arith.addf %74, %73 : vector<8x32xf32>
    %76 = arith.divf %74, %75 : vector<8x32xf32>
    %77 = arith.mulf %68, %44 : vector<8x32xf32>
    %78 = arith.mulf %62, %70 : vector<8x32xf32>
    %79 = arith.addf %77, %78 : vector<8x32xf32>
    %80 = math.tanh %79 : vector<8x32xf32>
    %81 = arith.mulf %76, %80 : vector<8x32xf32>
    %82 = arith.index_cast %c1_i32 : i32 to index
    %c0_22 = arith.constant 0 : index
    %c0_23 = arith.constant 0 : index
    %83 = vector.load %arg3[%82, %c0_22, %c0_23] : memref<8x1x32xf32, #tpu.memory_space<vmem>>, vector<1x1x32xf32>
    %84 = vector.shape_cast %83 : vector<1x1x32xf32> to vector<1x32xf32>
    %85 = arith.subf %79, %44 : vector<8x32xf32>
    %86 = vector.broadcast %84 : vector<1x32xf32> to vector<8x32xf32>
    %87 = arith.mulf %86, %85 : vector<8x32xf32>
    %88 = arith.addf %44, %87 : vector<8x32xf32>
    %89 = arith.subf %81, %48 : vector<8x32xf32>
    %90 = vector.broadcast %84 : vector<1x32xf32> to vector<8x32xf32>
    %91 = arith.mulf %90, %89 : vector<8x32xf32>
    %92 = arith.addf %48, %91 : vector<8x32xf32>
    %c2_i32 = arith.constant 2 : i32
    %93 = arith.index_cast %c2_i32 : i32 to index
    %c0_24 = arith.constant 0 : index
    %c0_25 = arith.constant 0 : index
    %94 = vector.load %arg2[%93, %c0_24, %c0_25] : memref<8x8x128xbf16, #tpu.memory_space<vmem>>, vector<1x8x128xbf16>
    %95 = vector.shape_cast %94 : vector<1x8x128xbf16> to vector<8x128xbf16>
    %96 = arith.extf %95 : vector<8x128xbf16> to vector<8x128xf32>
    %97 = arith.truncf %92 : vector<8x32xf32> to vector<8x32xbf16>
    %c0_26 = arith.constant 0 : index
    %c0_27 = arith.constant 0 : index
    %98 = vector.load %arg4[%c0_26, %c0_27] : memref<32x128xbf16, #tpu.memory_space<vmem>>, vector<32x128xbf16>
    %cst_28 = arith.constant dense<0.000000e+00> : vector<8x128xf32>
    %99 = tpu.matmul %97, %98, %cst_28 {dimension_numbers = #tpu.dot_dimension_numbers<[1], [0], [0], [1], [0, 0, 1, 1], [], []>} : vector<8x32xbf16>, vector<32x128xbf16>, vector<8x128xf32> -> vector<8x128xf32>
    %100 = arith.addf %96, %99 : vector<8x128xf32>
    %101 = vector.extract_strided_slice %100 {offsets = [0, 0], sizes = [8, 32], strides = [1, 1]} : vector<8x128xf32> to vector<8x32xf32>
    %102 = arith.negf %101 : vector<8x32xf32>
    %103 = math.exp %102 : vector<8x32xf32>
    %cst_29 = arith.constant 1.000000e+00 : f32
    %104 = vector.broadcast %cst_29 : f32 to vector<8x32xf32>
    %105 = arith.addf %104, %103 : vector<8x32xf32>
    %106 = arith.divf %104, %105 : vector<8x32xf32>
    %107 = vector.extract_strided_slice %100 {offsets = [0, 32], sizes = [8, 32], strides = [1, 1]} : vector<8x128xf32> to vector<8x32xf32>
    %108 = arith.negf %107 : vector<8x32xf32>
    %109 = math.exp %108 : vector<8x32xf32>
    %cst_30 = arith.constant 1.000000e+00 : f32
    %110 = vector.broadcast %cst_30 : f32 to vector<8x32xf32>
    %111 = arith.addf %110, %109 : vector<8x32xf32>
    %112 = arith.divf %110, %111 : vector<8x32xf32>
    %113 = vector.extract_strided_slice %100 {offsets = [0, 64], sizes = [8, 32], strides = [1, 1]} : vector<8x128xf32> to vector<8x32xf32>
    %114 = math.tanh %113 : vector<8x32xf32>
    %115 = vector.extract_strided_slice %100 {offsets = [0, 96], sizes = [8, 32], strides = [1, 1]} : vector<8x128xf32> to vector<8x32xf32>
    %116 = arith.negf %115 : vector<8x32xf32>
    %117 = math.exp %116 : vector<8x32xf32>
    %cst_31 = arith.constant 1.000000e+00 : f32
    %118 = vector.broadcast %cst_31 : f32 to vector<8x32xf32>
    %119 = arith.addf %118, %117 : vector<8x32xf32>
    %120 = arith.divf %118, %119 : vector<8x32xf32>
    %121 = arith.mulf %112, %88 : vector<8x32xf32>
    %122 = arith.mulf %106, %114 : vector<8x32xf32>
    %123 = arith.addf %121, %122 : vector<8x32xf32>
    %124 = math.tanh %123 : vector<8x32xf32>
    %125 = arith.mulf %120, %124 : vector<8x32xf32>
    %126 = arith.index_cast %c2_i32 : i32 to index
    %c0_32 = arith.constant 0 : index
    %c0_33 = arith.constant 0 : index
    %127 = vector.load %arg3[%126, %c0_32, %c0_33] : memref<8x1x32xf32, #tpu.memory_space<vmem>>, vector<1x1x32xf32>
    %128 = vector.shape_cast %127 : vector<1x1x32xf32> to vector<1x32xf32>
    %129 = arith.subf %123, %88 : vector<8x32xf32>
    %130 = vector.broadcast %128 : vector<1x32xf32> to vector<8x32xf32>
    %131 = arith.mulf %130, %129 : vector<8x32xf32>
    %132 = arith.addf %88, %131 : vector<8x32xf32>
    %133 = arith.subf %125, %92 : vector<8x32xf32>
    %134 = vector.broadcast %128 : vector<1x32xf32> to vector<8x32xf32>
    %135 = arith.mulf %134, %133 : vector<8x32xf32>
    %136 = arith.addf %92, %135 : vector<8x32xf32>
    %c3_i32 = arith.constant 3 : i32
    %137 = arith.index_cast %c3_i32 : i32 to index
    %c0_34 = arith.constant 0 : index
    %c0_35 = arith.constant 0 : index
    %138 = vector.load %arg2[%137, %c0_34, %c0_35] : memref<8x8x128xbf16, #tpu.memory_space<vmem>>, vector<1x8x128xbf16>
    %139 = vector.shape_cast %138 : vector<1x8x128xbf16> to vector<8x128xbf16>
    %140 = arith.extf %139 : vector<8x128xbf16> to vector<8x128xf32>
    %141 = arith.truncf %136 : vector<8x32xf32> to vector<8x32xbf16>
    %c0_36 = arith.constant 0 : index
    %c0_37 = arith.constant 0 : index
    %142 = vector.load %arg4[%c0_36, %c0_37] : memref<32x128xbf16, #tpu.memory_space<vmem>>, vector<32x128xbf16>
    %cst_38 = arith.constant dense<0.000000e+00> : vector<8x128xf32>
    %143 = tpu.matmul %141, %142, %cst_38 {dimension_numbers = #tpu.dot_dimension_numbers<[1], [0], [0], [1], [0, 0, 1, 1], [], []>} : vector<8x32xbf16>, vector<32x128xbf16>, vector<8x128xf32> -> vector<8x128xf32>
    %144 = arith.addf %140, %143 : vector<8x128xf32>
    %145 = vector.extract_strided_slice %144 {offsets = [0, 0], sizes = [8, 32], strides = [1, 1]} : vector<8x128xf32> to vector<8x32xf32>
    %146 = arith.negf %145 : vector<8x32xf32>
    %147 = math.exp %146 : vector<8x32xf32>
    %cst_39 = arith.constant 1.000000e+00 : f32
    %148 = vector.broadcast %cst_39 : f32 to vector<8x32xf32>
    %149 = arith.addf %148, %147 : vector<8x32xf32>
    %150 = arith.divf %148, %149 : vector<8x32xf32>
    %151 = vector.extract_strided_slice %144 {offsets = [0, 32], sizes = [8, 32], strides = [1, 1]} : vector<8x128xf32> to vector<8x32xf32>
    %152 = arith.negf %151 : vector<8x32xf32>
    %153 = math.exp %152 : vector<8x32xf32>
    %cst_40 = arith.constant 1.000000e+00 : f32
    %154 = vector.broadcast %cst_40 : f32 to vector<8x32xf32>
    %155 = arith.addf %154, %153 : vector<8x32xf32>
    %156 = arith.divf %154, %155 : vector<8x32xf32>
    %157 = vector.extract_strided_slice %144 {offsets = [0, 64], sizes = [8, 32], strides = [1, 1]} : vector<8x128xf32> to vector<8x32xf32>
    %158 = math.tanh %157 : vector<8x32xf32>
    %159 = vector.extract_strided_slice %144 {offsets = [0, 96], sizes = [8, 32], strides = [1, 1]} : vector<8x128xf32> to vector<8x32xf32>
    %160 = arith.negf %159 : vector<8x32xf32>
    %161 = math.exp %160 : vector<8x32xf32>
    %cst_41 = arith.constant 1.000000e+00 : f32
    %162 = vector.broadcast %cst_41 : f32 to vector<8x32xf32>
    %163 = arith.addf %162, %161 : vector<8x32xf32>
    %164 = arith.divf %162, %163 : vector<8x32xf32>
    %165 = arith.mulf %156, %132 : vector<8x32xf32>
    %166 = arith.mulf %150, %158 : vector<8x32xf32>
    %167 = arith.addf %165, %166 : vector<8x32xf32>
    %168 = math.tanh %167 : vector<8x32xf32>
    %169 = arith.mulf %164, %168 : vector<8x32xf32>
    %170 = arith.index_cast %c3_i32 : i32 to index
    %c0_42 = arith.constant 0 : index
    %c0_43 = arith.constant 0 : index
    %171 = vector.load %arg3[%170, %c0_42, %c0_43] : memref<8x1x32xf32, #tpu.memory_space<vmem>>, vector<1x1x32xf32>
    %172 = vector.shape_cast %171 : vector<1x1x32xf32> to vector<1x32xf32>
    %173 = arith.subf %167, %132 : vector<8x32xf32>
    %174 = vector.broadcast %172 : vector<1x32xf32> to vector<8x32xf32>
    %175 = arith.mulf %174, %173 : vector<8x32xf32>
    %176 = arith.addf %132, %175 : vector<8x32xf32>
    %177 = arith.subf %169, %136 : vector<8x32xf32>
    %178 = vector.broadcast %172 : vector<1x32xf32> to vector<8x32xf32>
    %179 = arith.mulf %178, %177 : vector<8x32xf32>
    %180 = arith.addf %136, %179 : vector<8x32xf32>
    %c4_i32 = arith.constant 4 : i32
    %181 = arith.index_cast %c4_i32 : i32 to index
    %c0_44 = arith.constant 0 : index
    %c0_45 = arith.constant 0 : index
    %182 = vector.load %arg2[%181, %c0_44, %c0_45] : memref<8x8x128xbf16, #tpu.memory_space<vmem>>, vector<1x8x128xbf16>
    %183 = vector.shape_cast %182 : vector<1x8x128xbf16> to vector<8x128xbf16>
    %184 = arith.extf %183 : vector<8x128xbf16> to vector<8x128xf32>
    %185 = arith.truncf %180 : vector<8x32xf32> to vector<8x32xbf16>
    %c0_46 = arith.constant 0 : index
    %c0_47 = arith.constant 0 : index
    %186 = vector.load %arg4[%c0_46, %c0_47] : memref<32x128xbf16, #tpu.memory_space<vmem>>, vector<32x128xbf16>
    %cst_48 = arith.constant dense<0.000000e+00> : vector<8x128xf32>
    %187 = tpu.matmul %185, %186, %cst_48 {dimension_numbers = #tpu.dot_dimension_numbers<[1], [0], [0], [1], [0, 0, 1, 1], [], []>} : vector<8x32xbf16>, vector<32x128xbf16>, vector<8x128xf32> -> vector<8x128xf32>
    %188 = arith.addf %184, %187 : vector<8x128xf32>
    %189 = vector.extract_strided_slice %188 {offsets = [0, 0], sizes = [8, 32], strides = [1, 1]} : vector<8x128xf32> to vector<8x32xf32>
    %190 = arith.negf %189 : vector<8x32xf32>
    %191 = math.exp %190 : vector<8x32xf32>
    %cst_49 = arith.constant 1.000000e+00 : f32
    %192 = vector.broadcast %cst_49 : f32 to vector<8x32xf32>
    %193 = arith.addf %192, %191 : vector<8x32xf32>
    %194 = arith.divf %192, %193 : vector<8x32xf32>
    %195 = vector.extract_strided_slice %188 {offsets = [0, 32], sizes = [8, 32], strides = [1, 1]} : vector<8x128xf32> to vector<8x32xf32>
    %196 = arith.negf %195 : vector<8x32xf32>
    %197 = math.exp %196 : vector<8x32xf32>
    %cst_50 = arith.constant 1.000000e+00 : f32
    %198 = vector.broadcast %cst_50 : f32 to vector<8x32xf32>
    %199 = arith.addf %198, %197 : vector<8x32xf32>
    %200 = arith.divf %198, %199 : vector<8x32xf32>
    %201 = vector.extract_strided_slice %188 {offsets = [0, 64], sizes = [8, 32], strides = [1, 1]} : vector<8x128xf32> to vector<8x32xf32>
    %202 = math.tanh %201 : vector<8x32xf32>
    %203 = vector.extract_strided_slice %188 {offsets = [0, 96], sizes = [8, 32], strides = [1, 1]} : vector<8x128xf32> to vector<8x32xf32>
    %204 = arith.negf %203 : vector<8x32xf32>
    %205 = math.exp %204 : vector<8x32xf32>
    %cst_51 = arith.constant 1.000000e+00 : f32
    %206 = vector.broadcast %cst_51 : f32 to vector<8x32xf32>
    %207 = arith.addf %206, %205 : vector<8x32xf32>
    %208 = arith.divf %206, %207 : vector<8x32xf32>
    %209 = arith.mulf %200, %176 : vector<8x32xf32>
    %210 = arith.mulf %194, %202 : vector<8x32xf32>
    %211 = arith.addf %209, %210 : vector<8x32xf32>
    %212 = math.tanh %211 : vector<8x32xf32>
    %213 = arith.mulf %208, %212 : vector<8x32xf32>
    %214 = arith.index_cast %c4_i32 : i32 to index
    %c0_52 = arith.constant 0 : index
    %c0_53 = arith.constant 0 : index
    %215 = vector.load %arg3[%214, %c0_52, %c0_53] : memref<8x1x32xf32, #tpu.memory_space<vmem>>, vector<1x1x32xf32>
    %216 = vector.shape_cast %215 : vector<1x1x32xf32> to vector<1x32xf32>
    %217 = arith.subf %211, %176 : vector<8x32xf32>
    %218 = vector.broadcast %216 : vector<1x32xf32> to vector<8x32xf32>
    %219 = arith.mulf %218, %217 : vector<8x32xf32>
    %220 = arith.addf %176, %219 : vector<8x32xf32>
    %221 = arith.subf %213, %180 : vector<8x32xf32>
    %222 = vector.broadcast %216 : vector<1x32xf32> to vector<8x32xf32>
    %223 = arith.mulf %222, %221 : vector<8x32xf32>
    %224 = arith.addf %180, %223 : vector<8x32xf32>
    %c5_i32 = arith.constant 5 : i32
    %225 = arith.index_cast %c5_i32 : i32 to index
    %c0_54 = arith.constant 0 : index
    %c0_55 = arith.constant 0 : index
    %226 = vector.load %arg2[%225, %c0_54, %c0_55] : memref<8x8x128xbf16, #tpu.memory_space<vmem>>, vector<1x8x128xbf16>
    %227 = vector.shape_cast %226 : vector<1x8x128xbf16> to vector<8x128xbf16>
    %228 = arith.extf %227 : vector<8x128xbf16> to vector<8x128xf32>
    %229 = arith.truncf %224 : vector<8x32xf32> to vector<8x32xbf16>
    %c0_56 = arith.constant 0 : index
    %c0_57 = arith.constant 0 : index
    %230 = vector.load %arg4[%c0_56, %c0_57] : memref<32x128xbf16, #tpu.memory_space<vmem>>, vector<32x128xbf16>
    %cst_58 = arith.constant dense<0.000000e+00> : vector<8x128xf32>
    %231 = tpu.matmul %229, %230, %cst_58 {dimension_numbers = #tpu.dot_dimension_numbers<[1], [0], [0], [1], [0, 0, 1, 1], [], []>} : vector<8x32xbf16>, vector<32x128xbf16>, vector<8x128xf32> -> vector<8x128xf32>
    %232 = arith.addf %228, %231 : vector<8x128xf32>
    %233 = vector.extract_strided_slice %232 {offsets = [0, 0], sizes = [8, 32], strides = [1, 1]} : vector<8x128xf32> to vector<8x32xf32>
    %234 = arith.negf %233 : vector<8x32xf32>
    %235 = math.exp %234 : vector<8x32xf32>
    %cst_59 = arith.constant 1.000000e+00 : f32
    %236 = vector.broadcast %cst_59 : f32 to vector<8x32xf32>
    %237 = arith.addf %236, %235 : vector<8x32xf32>
    %238 = arith.divf %236, %237 : vector<8x32xf32>
    %239 = vector.extract_strided_slice %232 {offsets = [0, 32], sizes = [8, 32], strides = [1, 1]} : vector<8x128xf32> to vector<8x32xf32>
    %240 = arith.negf %239 : vector<8x32xf32>
    %241 = math.exp %240 : vector<8x32xf32>
    %cst_60 = arith.constant 1.000000e+00 : f32
    %242 = vector.broadcast %cst_60 : f32 to vector<8x32xf32>
    %243 = arith.addf %242, %241 : vector<8x32xf32>
    %244 = arith.divf %242, %243 : vector<8x32xf32>
    %245 = vector.extract_strided_slice %232 {offsets = [0, 64], sizes = [8, 32], strides = [1, 1]} : vector<8x128xf32> to vector<8x32xf32>
    %246 = math.tanh %245 : vector<8x32xf32>
    %247 = vector.extract_strided_slice %232 {offsets = [0, 96], sizes = [8, 32], strides = [1, 1]} : vector<8x128xf32> to vector<8x32xf32>
    %248 = arith.negf %247 : vector<8x32xf32>
    %249 = math.exp %248 : vector<8x32xf32>
    %cst_61 = arith.constant 1.000000e+00 : f32
    %250 = vector.broadcast %cst_61 : f32 to vector<8x32xf32>
    %251 = arith.addf %250, %249 : vector<8x32xf32>
    %252 = arith.divf %250, %251 : vector<8x32xf32>
    %253 = arith.mulf %244, %220 : vector<8x32xf32>
    %254 = arith.mulf %238, %246 : vector<8x32xf32>
    %255 = arith.addf %253, %254 : vector<8x32xf32>
    %256 = math.tanh %255 : vector<8x32xf32>
    %257 = arith.mulf %252, %256 : vector<8x32xf32>
    %258 = arith.index_cast %c5_i32 : i32 to index
    %c0_62 = arith.constant 0 : index
    %c0_63 = arith.constant 0 : index
    %259 = vector.load %arg3[%258, %c0_62, %c0_63] : memref<8x1x32xf32, #tpu.memory_space<vmem>>, vector<1x1x32xf32>
    %260 = vector.shape_cast %259 : vector<1x1x32xf32> to vector<1x32xf32>
    %261 = arith.subf %255, %220 : vector<8x32xf32>
    %262 = vector.broadcast %260 : vector<1x32xf32> to vector<8x32xf32>
    %263 = arith.mulf %262, %261 : vector<8x32xf32>
    %264 = arith.addf %220, %263 : vector<8x32xf32>
    %265 = arith.subf %257, %224 : vector<8x32xf32>
    %266 = vector.broadcast %260 : vector<1x32xf32> to vector<8x32xf32>
    %267 = arith.mulf %266, %265 : vector<8x32xf32>
    %268 = arith.addf %224, %267 : vector<8x32xf32>
    %c6_i32 = arith.constant 6 : i32
    %269 = arith.index_cast %c6_i32 : i32 to index
    %c0_64 = arith.constant 0 : index
    %c0_65 = arith.constant 0 : index
    %270 = vector.load %arg2[%269, %c0_64, %c0_65] : memref<8x8x128xbf16, #tpu.memory_space<vmem>>, vector<1x8x128xbf16>
    %271 = vector.shape_cast %270 : vector<1x8x128xbf16> to vector<8x128xbf16>
    %272 = arith.extf %271 : vector<8x128xbf16> to vector<8x128xf32>
    %273 = arith.truncf %268 : vector<8x32xf32> to vector<8x32xbf16>
    %c0_66 = arith.constant 0 : index
    %c0_67 = arith.constant 0 : index
    %274 = vector.load %arg4[%c0_66, %c0_67] : memref<32x128xbf16, #tpu.memory_space<vmem>>, vector<32x128xbf16>
    %cst_68 = arith.constant dense<0.000000e+00> : vector<8x128xf32>
    %275 = tpu.matmul %273, %274, %cst_68 {dimension_numbers = #tpu.dot_dimension_numbers<[1], [0], [0], [1], [0, 0, 1, 1], [], []>} : vector<8x32xbf16>, vector<32x128xbf16>, vector<8x128xf32> -> vector<8x128xf32>
    %276 = arith.addf %272, %275 : vector<8x128xf32>
    %277 = vector.extract_strided_slice %276 {offsets = [0, 0], sizes = [8, 32], strides = [1, 1]} : vector<8x128xf32> to vector<8x32xf32>
    %278 = arith.negf %277 : vector<8x32xf32>
    %279 = math.exp %278 : vector<8x32xf32>
    %cst_69 = arith.constant 1.000000e+00 : f32
    %280 = vector.broadcast %cst_69 : f32 to vector<8x32xf32>
    %281 = arith.addf %280, %279 : vector<8x32xf32>
    %282 = arith.divf %280, %281 : vector<8x32xf32>
    %283 = vector.extract_strided_slice %276 {offsets = [0, 32], sizes = [8, 32], strides = [1, 1]} : vector<8x128xf32> to vector<8x32xf32>
    %284 = arith.negf %283 : vector<8x32xf32>
    %285 = math.exp %284 : vector<8x32xf32>
    %cst_70 = arith.constant 1.000000e+00 : f32
    %286 = vector.broadcast %cst_70 : f32 to vector<8x32xf32>
    %287 = arith.addf %286, %285 : vector<8x32xf32>
    %288 = arith.divf %286, %287 : vector<8x32xf32>
    %289 = vector.extract_strided_slice %276 {offsets = [0, 64], sizes = [8, 32], strides = [1, 1]} : vector<8x128xf32> to vector<8x32xf32>
    %290 = math.tanh %289 : vector<8x32xf32>
    %291 = vector.extract_strided_slice %276 {offsets = [0, 96], sizes = [8, 32], strides = [1, 1]} : vector<8x128xf32> to vector<8x32xf32>
    %292 = arith.negf %291 : vector<8x32xf32>
    %293 = math.exp %292 : vector<8x32xf32>
    %cst_71 = arith.constant 1.000000e+00 : f32
    %294 = vector.broadcast %cst_71 : f32 to vector<8x32xf32>
    %295 = arith.addf %294, %293 : vector<8x32xf32>
    %296 = arith.divf %294, %295 : vector<8x32xf32>
    %297 = arith.mulf %288, %264 : vector<8x32xf32>
    %298 = arith.mulf %282, %290 : vector<8x32xf32>
    %299 = arith.addf %297, %298 : vector<8x32xf32>
    %300 = math.tanh %299 : vector<8x32xf32>
    %301 = arith.mulf %296, %300 : vector<8x32xf32>
    %302 = arith.index_cast %c6_i32 : i32 to index
    %c0_72 = arith.constant 0 : index
    %c0_73 = arith.constant 0 : index
    %303 = vector.load %arg3[%302, %c0_72, %c0_73] : memref<8x1x32xf32, #tpu.memory_space<vmem>>, vector<1x1x32xf32>
    %304 = vector.shape_cast %303 : vector<1x1x32xf32> to vector<1x32xf32>
    %305 = arith.subf %299, %264 : vector<8x32xf32>
    %306 = vector.broadcast %304 : vector<1x32xf32> to vector<8x32xf32>
    %307 = arith.mulf %306, %305 : vector<8x32xf32>
    %308 = arith.addf %264, %307 : vector<8x32xf32>
    %309 = arith.subf %301, %268 : vector<8x32xf32>
    %310 = vector.broadcast %304 : vector<1x32xf32> to vector<8x32xf32>
    %311 = arith.mulf %310, %309 : vector<8x32xf32>
    %312 = arith.addf %268, %311 : vector<8x32xf32>
    %c7_i32 = arith.constant 7 : i32
    %313 = arith.index_cast %c7_i32 : i32 to index
    %c0_74 = arith.constant 0 : index
    %c0_75 = arith.constant 0 : index
    %314 = vector.load %arg2[%313, %c0_74, %c0_75] : memref<8x8x128xbf16, #tpu.memory_space<vmem>>, vector<1x8x128xbf16>
    %315 = vector.shape_cast %314 : vector<1x8x128xbf16> to vector<8x128xbf16>
    %316 = arith.extf %315 : vector<8x128xbf16> to vector<8x128xf32>
    %317 = arith.truncf %312 : vector<8x32xf32> to vector<8x32xbf16>
    %c0_76 = arith.constant 0 : index
    %c0_77 = arith.constant 0 : index
    %318 = vector.load %arg4[%c0_76, %c0_77] : memref<32x128xbf16, #tpu.memory_space<vmem>>, vector<32x128xbf16>
    %cst_78 = arith.constant dense<0.000000e+00> : vector<8x128xf32>
    %319 = tpu.matmul %317, %318, %cst_78 {dimension_numbers = #tpu.dot_dimension_numbers<[1], [0], [0], [1], [0, 0, 1, 1], [], []>} : vector<8x32xbf16>, vector<32x128xbf16>, vector<8x128xf32> -> vector<8x128xf32>
    %320 = arith.addf %316, %319 : vector<8x128xf32>
    %321 = vector.extract_strided_slice %320 {offsets = [0, 0], sizes = [8, 32], strides = [1, 1]} : vector<8x128xf32> to vector<8x32xf32>
    %322 = arith.negf %321 : vector<8x32xf32>
    %323 = math.exp %322 : vector<8x32xf32>
    %cst_79 = arith.constant 1.000000e+00 : f32
    %324 = vector.broadcast %cst_79 : f32 to vector<8x32xf32>
    %325 = arith.addf %324, %323 : vector<8x32xf32>
    %326 = arith.divf %324, %325 : vector<8x32xf32>
    %327 = vector.extract_strided_slice %320 {offsets = [0, 32], sizes = [8, 32], strides = [1, 1]} : vector<8x128xf32> to vector<8x32xf32>
    %328 = arith.negf %327 : vector<8x32xf32>
    %329 = math.exp %328 : vector<8x32xf32>
    %cst_80 = arith.constant 1.000000e+00 : f32
    %330 = vector.broadcast %cst_80 : f32 to vector<8x32xf32>
    %331 = arith.addf %330, %329 : vector<8x32xf32>
    %332 = arith.divf %330, %331 : vector<8x32xf32>
    %333 = vector.extract_strided_slice %320 {offsets = [0, 64], sizes = [8, 32], strides = [1, 1]} : vector<8x128xf32> to vector<8x32xf32>
    %334 = math.tanh %333 : vector<8x32xf32>
    %335 = vector.extract_strided_slice %320 {offsets = [0, 96], sizes = [8, 32], strides = [1, 1]} : vector<8x128xf32> to vector<8x32xf32>
    %336 = arith.negf %335 : vector<8x32xf32>
    %337 = math.exp %336 : vector<8x32xf32>
    %cst_81 = arith.constant 1.000000e+00 : f32
    %338 = vector.broadcast %cst_81 : f32 to vector<8x32xf32>
    %339 = arith.addf %338, %337 : vector<8x32xf32>
    %340 = arith.divf %338, %339 : vector<8x32xf32>
    %341 = arith.mulf %332, %308 : vector<8x32xf32>
    %342 = arith.mulf %326, %334 : vector<8x32xf32>
    %343 = arith.addf %341, %342 : vector<8x32xf32>
    %344 = math.tanh %343 : vector<8x32xf32>
    %345 = arith.mulf %340, %344 : vector<8x32xf32>
    %346 = arith.index_cast %c7_i32 : i32 to index
    %c0_82 = arith.constant 0 : index
    %c0_83 = arith.constant 0 : index
    %347 = vector.load %arg3[%346, %c0_82, %c0_83] : memref<8x1x32xf32, #tpu.memory_space<vmem>>, vector<1x1x32xf32>
    %348 = vector.shape_cast %347 : vector<1x1x32xf32> to vector<1x32xf32>
    %349 = arith.subf %343, %308 : vector<8x32xf32>
    %350 = vector.broadcast %348 : vector<1x32xf32> to vector<8x32xf32>
    %351 = arith.mulf %350, %349 : vector<8x32xf32>
    %352 = arith.addf %308, %351 : vector<8x32xf32>
    %353 = arith.subf %345, %312 : vector<8x32xf32>
    %354 = vector.broadcast %348 : vector<1x32xf32> to vector<8x32xf32>
    %355 = arith.mulf %354, %353 : vector<8x32xf32>
    %356 = arith.addf %312, %355 : vector<8x32xf32>
    %c8_i32 = arith.constant 8 : i32
    %c0_84 = arith.constant 0 : index
    %c0_85 = arith.constant 0 : index
    %357 = vector.load %arg12[%c0_84, %c0_85] : memref<8x32xf32, #tpu.memory_space<vmem>>, vector<8x32xf32>
    tpu.vector_store %arg12[%c0_84, %c0_85], %356 {strides = array<i32>} : memref<8x32xf32, #tpu.memory_space<vmem>>, vector<8x32xf32>,
    %c0_86 = arith.constant 0 : index
    %c0_87 = arith.constant 0 : index
    %358 = vector.load %arg13[%c0_86, %c0_87] : memref<8x32xf32, #tpu.memory_space<vmem>>, vector<8x32xf32>
    tpu.vector_store %arg13[%c0_86, %c0_87], %352 {strides = array<i32>} : memref<8x32xf32, #tpu.memory_space<vmem>>, vector<8x32xf32>,
    %c0_i32_88 = arith.constant 0 : i32
    %359 = arith.cmpi eq, %arg1, %c0_i32_88 : i32
    %360 = arith.extui %359 : i1 to i32
    %c0_i32_89 = arith.constant 0 : i32
    %361 = arith.cmpi ne, %360, %c0_i32_89 : i32
    scf.if %361 {
      %cst_90 = arith.constant dense<0.000000e+00> : vector<8xf32>
      %362 = vector.multi_reduction <add>, %356, %cst_90 [1] : vector<8x32xf32> to vector<8xf32>
      %363 = vector.shape_cast %362 : vector<8xf32> to vector<8x1xf32>
      %cst_91 = arith.constant 3.200000e+01 : f32
      %364 = vector.broadcast %cst_91 : f32 to vector<8x1xf32>
      %365 = arith.divf %363, %364 : vector<8x1xf32>
      %366 = vector.broadcast %365 : vector<8x1xf32> to vector<8x32xf32>
      %367 = arith.subf %356, %366 : vector<8x32xf32>
      %368 = arith.mulf %367, %367 : vector<8x32xf32>
      %cst_92 = arith.constant dense<0.000000e+00> : vector<8xf32>
      %369 = vector.multi_reduction <add>, %368, %cst_92 [1] : vector<8x32xf32> to vector<8xf32>
      %370 = vector.shape_cast %369 : vector<8xf32> to vector<8x1xf32>
      %cst_93 = arith.constant 3.200000e+01 : f32
      %371 = vector.broadcast %cst_93 : f32 to vector<8x1xf32>
      %372 = arith.divf %370, %371 : vector<8x1xf32>
      %cst_94 = arith.constant 9.99999974E-6 : f32
      %373 = vector.broadcast %cst_94 : f32 to vector<8x1xf32>
      %374 = arith.addf %372, %373 : vector<8x1xf32>
      %375 = math.rsqrt %374 : vector<8x1xf32>
      %376 = vector.broadcast %375 : vector<8x1xf32> to vector<8x32xf32>
      %377 = arith.mulf %367, %376 : vector<8x32xf32>
      %c0_95 = arith.constant 0 : index
      %c0_96 = arith.constant 0 : index
      %378 = vector.load %arg5[%c0_95, %c0_96] : memref<1x32xf32, #tpu.memory_space<vmem>>, vector<1x32xf32>
      %379 = vector.broadcast %378 : vector<1x32xf32> to vector<8x32xf32>
      %380 = arith.mulf %377, %379 : vector<8x32xf32>
      %c0_97 = arith.constant 0 : index
      %c0_98 = arith.constant 0 : index
      %381 = vector.load %arg6[%c0_97, %c0_98] : memref<1x32xf32, #tpu.memory_space<vmem>>, vector<1x32xf32>
      %382 = vector.broadcast %381 : vector<1x32xf32> to vector<8x32xf32>
      %383 = arith.addf %380, %382 : vector<8x32xf32>
      %384 = arith.truncf %383 : vector<8x32xf32> to vector<8x32xbf16>
      %c0_99 = arith.constant 0 : index
      %c0_100 = arith.constant 0 : index
      %385 = vector.load %arg7[%c0_99, %c0_100] : memref<32x16xbf16, #tpu.memory_space<vmem>>, vector<32x16xbf16>
      %cst_101 = arith.constant dense<0.000000e+00> : vector<8x16xf32>
      %386 = tpu.matmul %384, %385, %cst_101 {dimension_numbers = #tpu.dot_dimension_numbers<[1], [0], [0], [1], [0, 0, 1, 1], [], []>} : vector<8x32xbf16>, vector<32x16xbf16>, vector<8x16xf32> -> vector<8x16xf32>
      %c0_102 = arith.constant 0 : index
      %c0_103 = arith.constant 0 : index
      %387 = vector.load %arg8[%c0_102, %c0_103] : memref<1x16xf32, #tpu.memory_space<vmem>>, vector<1x16xf32>
      %388 = vector.broadcast %387 : vector<1x16xf32> to vector<8x16xf32>
      %389 = arith.addf %386, %388 : vector<8x16xf32>
      %c0_104 = arith.constant 0 : index
      %c0_105 = arith.constant 0 : index
      %390 = vector.load %arg9[%c0_104, %c0_105] : memref<1x16xf32, #tpu.memory_space<vmem>>, vector<1x16xf32>
      %391 = vector.broadcast %390 : vector<1x16xf32> to vector<8x16xf32>
      %392 = arith.mulf %389, %391 : vector<8x16xf32>
      %cst_106 = arith.constant dense<0.000000e+00> : vector<8xf32>
      %393 = vector.multi_reduction <add>, %392, %cst_106 [1] : vector<8x16xf32> to vector<8xf32>
      %394 = vector.shape_cast %393 : vector<8xf32> to vector<8x1xf32>
      %c0_107 = arith.constant 0 : index
      %c0_108 = arith.constant 0 : index
      %395 = vector.load %arg10[%c0_107, %c0_108] : memref<1x1xf32, #tpu.memory_space<vmem>>, vector<1x1xf32>
      %396 = vector.broadcast %395 : vector<1x1xf32> to vector<8x1xf32>
      %397 = arith.addf %394, %396 : vector<8x1xf32>
      %c0_109 = arith.constant 0 : index
      %c0_110 = arith.constant 0 : index
      %398 = vector.load %arg11[%c0_109, %c0_110] : memref<8x1xf32, #tpu.memory_space<vmem>>, vector<8x1xf32>
      tpu.vector_store %arg11[%c0_109, %c0_110], %397 {strides = array<i32>} : memref<8x1xf32, #tpu.memory_space<vmem>>, vector<8x1xf32>,
    } else {
    }
    return
  }
  func.func @transform_0(%arg0: i32, %arg1: i32) -> (i32, i32, i32) {
    %c0_i32 = arith.constant 0 : i32
    %c0_i32_0 = arith.constant 0 : i32
    return %arg1, %arg0, %c0_i32 : i32, i32, i32
  }
  func.func @transform_1(%arg0: i32, %arg1: i32) -> (i32, i32, i32) {
    %c0_i32 = arith.constant 0 : i32
    %c0_i32_0 = arith.constant 0 : i32
    %c0_i32_1 = arith.constant 0 : i32
    return %arg1, %c0_i32, %c0_i32_0 : i32, i32, i32
  }
  func.func @transform_2(%arg0: i32, %arg1: i32) -> (i32, i32) {
    %c0_i32 = arith.constant 0 : i32
    %c0_i32_0 = arith.constant 0 : i32
    %c0_i32_1 = arith.constant 0 : i32
    return %c0_i32, %c0_i32_0 : i32, i32
  }
  func.func @transform_3(%arg0: i32, %arg1: i32) -> (i32, i32) {
    %c0_i32 = arith.constant 0 : i32
    %c0_i32_0 = arith.constant 0 : i32
    %c0_i32_1 = arith.constant 0 : i32
    return %c0_i32, %c0_i32_0 : i32, i32
  }
  func.func @transform_4(%arg0: i32, %arg1: i32) -> (i32, i32) {
    %c0_i32 = arith.constant 0 : i32
    %c0_i32_0 = arith.constant 0 : i32
    %c0_i32_1 = arith.constant 0 : i32
    return %c0_i32, %c0_i32_0 : i32, i32
  }
  func.func @transform_5(%arg0: i32, %arg1: i32) -> (i32, i32) {
    %c0_i32 = arith.constant 0 : i32
    %c0_i32_0 = arith.constant 0 : i32
    %c0_i32_1 = arith.constant 0 : i32
    return %c0_i32, %c0_i32_0 : i32, i32
  }
  func.func @transform_6(%arg0: i32, %arg1: i32) -> (i32, i32) {
    %c0_i32 = arith.constant 0 : i32
    %c0_i32_0 = arith.constant 0 : i32
    %c0_i32_1 = arith.constant 0 : i32
    return %c0_i32, %c0_i32_0 : i32, i32
  }
  func.func @transform_7(%arg0: i32, %arg1: i32) -> (i32, i32) {
    %c0_i32 = arith.constant 0 : i32
    %c0_i32_0 = arith.constant 0 : i32
    %c0_i32_1 = arith.constant 0 : i32
    return %c0_i32, %c0_i32_0 : i32, i32
  }
  func.func @transform_8(%arg0: i32, %arg1: i32) -> (i32, i32) {
    %c0_i32 = arith.constant 0 : i32
    %c0_i32_0 = arith.constant 0 : i32
    %c0_i32_1 = arith.constant 0 : i32
    return %c0_i32, %c0_i32_0 : i32, i32
  }
  func.func @transform_9(%arg0: i32, %arg1: i32) -> (i32, i32) {
    %c0_i32 = arith.constant 0 : i32
    %c0_i32_0 = arith.constant 0 : i32
    return %arg0, %c0_i32 : i32, i32
  }
}

</mosaic_0001>

<llo_original>
// kernel: phased_lstm_forward.1
$region0: #{phased_lstm_forward.1}
  #allocation0 [shape = 'u32[]', space=smem, size = 0x4, offset = 0x4, fixed_abs, tag = 'smem constant byte address 0x4 - core index']
  #allocation1 [shape = 'u32[144,128]{1,0:T(1,128)}', space=vmem, size = 0x12000, scoped, tag = 'internal scratch']
  #allocation2 [shape = 'f32[8,32]{1,0:T(8,128)}', space=vmem, size = 0x1000, scoped, tag = 'scratch operand']
  #allocation3 [shape = 'f32[8,32]{1,0:T(8,128)}', space=vmem, size = 0x1000, scoped, tag = 'scratch operand']
  #allocation4 [shape = 'f32[1,1]{1,0:T(1,128)S(1)}', space=vmem, size = 0x200, scoped, tag = 'scoped memory for phased_lstm_forward.1']
  %s0 = inlined_call_operand.vmem [shape: bf16[8,8,128], index: 0, kind: input, shape index: {}]
  %s1 = inlined_call_operand.vmem [shape: f32[8,1,32], index: 1, kind: input, shape index: {}]
  %s2 = inlined_call_operand.vmem [shape: bf16[32,128], index: 2, kind: input, shape index: {}]
  %s3 = inlined_call_operand.vmem [shape: f32[1,32], index: 3, kind: input, shape index: {}]
  %s4 = inlined_call_operand.vmem [shape: f32[1,32], index: 4, kind: input, shape index: {}]
  %s5 = inlined_call_operand.vmem [shape: bf16[32,16], index: 5, kind: input, shape index: {}]
  %s6 = inlined_call_operand.vmem [shape: f32[1,16], index: 6, kind: input, shape index: {}]
  %s7 = inlined_call_operand.vmem [shape: f32[1,16], index: 7, kind: input, shape index: {}]
  %s8 = inlined_call_operand.<no memory space> [shape: f32[1,1], index: 8, kind: input, shape index: {}]
  %s9 = inlined_call_operand.vmem [shape: f32[8,1], index: 9, kind: output, shape index: {}]
  %s10 = sld [smem:[#allocation0]]
  $region54: #{phased_lstm_forward.1} parent=0
    _
  %s12 = ssub.s32 1, %s10
  %s13 = scalar_select 0, %s12, %s10
  %v14 = vstv %s8
  %15 = vst [vmem:[#allocation4] sm:$0x1] %v14
  // Predicated region
  $region2: #{phased_lstm_forward.1} parent=0 // pred_check
    _
  $region3: #{phased_lstm_forward.1} parent=0 // pred_check_branch
    %17 = sbr.rel (0) target = $region5
  $region4: #{phased_lstm_forward.1} parent=0 // pred_region
    _
  $region5: #{phased_lstm_forward.1} parent=0 // pred_fallthru
    _
  // Predicated region
  $region6: #{phased_lstm_forward.1} parent=0 // pred_check
    _
  $region7: #{phased_lstm_forward.1} parent=0 // pred_check_branch
    %19 = sbr.rel (0) target = $region9
  $region8: #{phased_lstm_forward.1} parent=0 // pred_region
    _
  $region9: #{phased_lstm_forward.1} parent=0 // pred_fallthru
    _
  // Predicated region
  $region10: #{phased_lstm_forward.1} parent=0 // pred_check
    _
  $region11: #{phased_lstm_forward.1} parent=0 // pred_check_branch
    %21 = sbr.rel (0) target = $region13
  $region12: #{phased_lstm_forward.1} parent=0 // pred_region
    _
  $region13: #{phased_lstm_forward.1} parent=0 // pred_fallthru
    _
  // Predicated region
  $region14: #{phased_lstm_forward.1} parent=0 // pred_check
    _
  $region15: #{phased_lstm_forward.1} parent=0 // pred_check_branch
    %23 = sbr.rel (0) target = $region17
  $region16: #{phased_lstm_forward.1} parent=0 // pred_region
    _
  $region17: #{phased_lstm_forward.1} parent=0 // pred_fallthru
    _
  // Predicated region
  $region18: #{phased_lstm_forward.1} parent=0 // pred_check
    _
  $region19: #{phased_lstm_forward.1} parent=0 // pred_check_branch
    %25 = sbr.rel (0) target = $region21
  $region20: #{phased_lstm_forward.1} parent=0 // pred_region
    _
  $region21: #{phased_lstm_forward.1} parent=0 // pred_fallthru
    _
  // Predicated region
  $region22: #{phased_lstm_forward.1} parent=0 // pred_check
    _
  $region23: #{phased_lstm_forward.1} parent=0 // pred_check_branch
    %27 = sbr.rel (0) target = $region25
  $region24: #{phased_lstm_forward.1} parent=0 // pred_region
    _
  $region25: #{phased_lstm_forward.1} parent=0 // pred_fallthru
    _
  // Predicated region
  $region26: #{phased_lstm_forward.1} parent=0 // pred_check
    _
  $region27: #{phased_lstm_forward.1} parent=0 // pred_check_branch
    %29 = sbr.rel (0) target = $region29
  $region28: #{phased_lstm_forward.1} parent=0 // pred_region
    _
  $region29: #{phased_lstm_forward.1} parent=0 // pred_fallthru
    _
  // Predicated region
  $region30: #{phased_lstm_forward.1} parent=0 // pred_check
    _
  $region31: #{phased_lstm_forward.1} parent=0 // pred_check_branch
    %31 = sbr.rel (0) target = $region33
  $region32: #{phased_lstm_forward.1} parent=0 // pred_region
    _
  $region33: #{phased_lstm_forward.1} parent=0 // pred_fallthru
    _
  // Predicated region
  $region34: #{phased_lstm_forward.1} parent=0 // pred_check
    _
  $region35: #{phased_lstm_forward.1} parent=0 // pred_check_branch
    %33 = sbr.rel (0) target = $region37
  $region36: #{phased_lstm_forward.1} parent=0 // pred_region
    _
  $region37: #{phased_lstm_forward.1} parent=0 // pred_fallthru
    _
  %p35 = scmp.eq.s32.totalorder 0, 0
  // Predicated region
  $region38: #{phased_lstm_forward.1} parent=0 // pred_check
    %p36 = pneg %p35
  $region39: #{phased_lstm_forward.1} parent=0 // pred_check_branch
    %38 = sbr.rel (%p36) target = $region41
  $region40: #{phased_lstm_forward.1} parent=0 // pred_region
    %vm39 = vcmask 261120
    %40 = vst.msk [vmem:[#allocation2] sm:$0xff] %vm39, 0.0
    %41 = vst.msk [vmem:[#allocation3] sm:$0xff] %vm39, 0.0
  $region41: #{phased_lstm_forward.1} parent=0 // pred_fallthru
    _
  %v42 = vld [vmem:[#allocation2] sm:$0xff]
  %v43 = vld [vmem:[#allocation3] sm:$0xff]
  %v44 = vld [vmem:[%s0] sm:$0xf]
  %v45 = vunpack.c.l.bf16 %v44
  %v46 = vpack.c.bf16 %v42, %v42
  %v47 = vld [vmem:[%s2] sm:$0xf]
  %v48 = vld [vmem:[%s2 + $0x4] sm:$0xf]
  %v49 = vld [vmem:[%s2 + $0x8] sm:$0xf]
  %v50 = vld [vmem:[%s2 + $0xc] sm:$0xf]
  %v55 = vunpack.c.l.b16 %v47
  %v56 = vunpack.c.l.b16 %v48
  %v57 = vunpack.c.l.b16 %v49
  %v58 = vunpack.c.l.b16 %v50
  %v59 = vpack.c.b16 %v56, %v55
  %v60 = vpack.c.b16 %v58, %v57
  %vm63 = vcmask 261120
  %v65 = vsel %vm63, %v46, 0
  %67 = vmatprep.subr.bf16.mxu0 0
  %68 = vmatpush1.bf16.msra.mxu0 %v59
  %69 = vmatprep.subr.bf16.mxu0 0
  %70 = vmatpush1.bf16.msra.mxu0 %v60
  %71 = vmatprep.subr.bf16.mxu0 0
  %72 = vmatpush1.bf16.msra.mxu0 0
  %73 = vmatprep.subr.bf16.mxu0 0
  %74 = vmatpush1.bf16.msra.mxu0 0
  %75 = vmatprep.subr.bf16.mxu0 0
  %76 = vmatpush1.bf16.msra.mxu0 0
  %77 = vmatprep.subr.bf16.mxu0 0
  %78 = vmatpush1.bf16.msra.mxu0 0
  %79 = vmatprep.subr.bf16.mxu0 0
  %80 = vmatpush1.bf16.msra.mxu0 0
  %81 = vmatprep.subr.bf16.mxu0 0
  %82 = vmatpush1.bf16.msra.mxu0 0
  %83 = vmatprep.subr.bf16.mxu0 0
  %84 = vmatpush1.bf16.msra.mxu0 0
  %85 = vmatprep.subr.bf16.mxu0 0
  %86 = vmatpush1.bf16.msra.mxu0 0
  %87 = vmatprep.subr.bf16.mxu0 0
  %88 = vmatpush1.bf16.msra.mxu0 0
  %89 = vmatprep.subr.bf16.mxu0 0
  %90 = vmatpush1.bf16.msra.mxu0 0
  %91 = vmatprep.subr.bf16.mxu0 0
  %92 = vmatpush1.bf16.msra.mxu0 0
  %93 = vmatprep.subr.bf16.mxu0 0
  %94 = vmatpush1.bf16.msra.mxu0 0
  %95 = vmatprep.subr.bf16.mxu0 0
  %96 = vmatpush1.bf16.msra.mxu0 0
  %97 = vmatprep.subr.bf16.mxu0 0
  %98 = vmatpush1.bf16.msra.mxu0 0
  %99 = vmatprep.mubr.bf16.mxu0 0
  %100 = vmatmul.mubr.bf16.gmra.mrb[0].mxu0 %v65
  %v101 = vpop.f32.mrb[0].mxu0
  %v102 = vadd.f32 0.0, %v101
  %v103 = vpop.f32.mrb[0].mxu0
  %v104 = vpop.f32.mrb[0].mxu0
  %v105 = vpop.f32.mrb[0].mxu0
  %106 = vdwg.mxu0
  %v107 = vadd.f32 %v45, %v102
  %v108 = vxor.u32 %v107, 2147483648
  %v109 = vmul.f32 %v108, 1.442695
  %v110 = vpow.pop %v109
  %v111 = vadd.f32 %v110, 1.0
  %v112 = vrcp.pop %v111
  %v113 = vmul.f32 1.0, %v112
  %v114 = vtanh.pop %v107
  %116 = vrot.lane.b32.xlu0 %v43, 32
  %v117 = vpop.permute.xlu0 %116
  %v119 = vmul.f32 %v113, %v117
  %121 = vrot.lane.b32.xlu0 %v114, 64
  %v122 = vpop.permute.xlu0 %121
  %v124 = vmul.f32 %v113, %v122
  %126 = vrot.lane.b32.xlu0 %v124, 32
  %v127 = vpop.permute.xlu0 %126
  %v129 = vadd.f32 %v119, %v127
  %v130 = vtanh.pop %v129
  %132 = vrot.lane.b32.xlu0 %v130, 64
  %v133 = vpop.permute.xlu0 %132
  %v135 = vmul.f32 %v113, %v133
  %v136 = vld [vmem:[%s1] sm:$0x1]
  %v137 = vsub.f32 %v129, %v117
  %v139 = vlaneseq
  %v140 = vshrl.u32 %v139, 7
  %v141 = vsub.s32 0, %v140
  %v142 = vrot.slane %v136, %v141
  %145 = vrot.lane.b32.xlu0 %v137, 96
  %v146 = vpop.permute.xlu0 %145
  %v148 = vmul.f32 %v142, %v146
  %v149 = vadd.f32 %v43, %v148
  %151 = vrot.lane.b32.xlu0 %v42, 96
  %v152 = vpop.permute.xlu0 %151
  %v154 = vsub.f32 %v135, %v152
  %156 = vrot.lane.b32.xlu0 %v154, 32
  %v157 = vpop.permute.xlu0 %156
  %v159 = vmul.f32 %v142, %v157
  %v160 = vadd.f32 %v42, %v159
  %s161 = scalar_lea.vmem %s0, 4
  %v162 = vld [vmem:[%s161] sm:$0xf]
  %v163 = vunpack.c.l.bf16 %v162
  %v164 = vpack.c.bf16 %v160, %v160
  %v166 = vsel %vm63, %v164, 0
  %168 = vmatprep.subr.bf16.mxu0 0
  %169 = vmatpush1.bf16.msra.mxu0 %v59
  %170 = vmatprep.subr.bf16.mxu0 0
  %171 = vmatpush1.bf16.msra.mxu0 %v60
  %172 = vmatprep.subr.bf16.mxu0 0
  %173 = vmatpush1.bf16.msra.mxu0 0
  %174 = vmatprep.subr.bf16.mxu0 0
  %175 = vmatpush1.bf16.msra.mxu0 0
  %176 = vmatprep.subr.bf16.mxu0 0
  %177 = vmatpush1.bf16.msra.mxu0 0
  %178 = vmatprep.subr.bf16.mxu0 0
  %179 = vmatpush1.bf16.msra.mxu0 0
  %180 = vmatprep.subr.bf16.mxu0 0
  %181 = vmatpush1.bf16.msra.mxu0 0
  %182 = vmatprep.subr.bf16.mxu0 0
  %183 = vmatpush1.bf16.msra.mxu0 0
  %184 = vmatprep.subr.bf16.mxu0 0
  %185 = vmatpush1.bf16.msra.mxu0 0
  %186 = vmatprep.subr.bf16.mxu0 0
  %187 = vmatpush1.bf16.msra.mxu0 0
  %188 = vmatprep.subr.bf16.mxu0 0
  %189 = vmatpush1.bf16.msra.mxu0 0
  %190 = vmatprep.subr.bf16.mxu0 0
  %191 = vmatpush1.bf16.msra.mxu0 0
  %192 = vmatprep.subr.bf16.mxu0 0
  %193 = vmatpush1.bf16.msra.mxu0 0
  %194 = vmatprep.subr.bf16.mxu0 0
  %195 = vmatpush1.bf16.msra.mxu0 0
  %196 = vmatprep.subr.bf16.mxu0 0
  %197 = vmatpush1.bf16.msra.mxu0 0
  %198 = vmatprep.subr.bf16.mxu0 0
  %199 = vmatpush1.bf16.msra.mxu0 0
  %200 = vmatprep.mubr.bf16.mxu0 0
  %201 = vmatmul.mubr.bf16.gmra.mrb[0].mxu0 %v166
  %v202 = vpop.f32.mrb[0].mxu0
  %v203 = vadd.f32 0.0, %v202
  %v204 = vpop.f32.mrb[0].mxu0
  %v205 = vpop.f32.mrb[0].mxu0
  %v206 = vpop.f32.mrb[0].mxu0
  %207 = vdwg.mxu0
  %v208 = vadd.f32 %v163, %v203
  %v209 = vxor.u32 %v208, 2147483648
  %v210 = vmul.f32 %v209, 1.442695
  %v211 = vpow.pop %v210
  %v212 = vadd.f32 %v211, 1.0
  %v213 = vrcp.pop %v212
  %v214 = vmul.f32 1.0, %v213
  %v215 = vtanh.pop %v208
  %217 = vrot.lane.b32.xlu0 %v149, 32
  %v218 = vpop.permute.xlu0 %217
  %v220 = vmul.f32 %v214, %v218
  %222 = vrot.lane.b32.xlu0 %v215, 64
  %v223 = vpop.permute.xlu0 %222
  %v225 = vmul.f32 %v214, %v223
  %227 = vrot.lane.b32.xlu0 %v225, 32
  %v228 = vpop.permute.xlu0 %227
  %v230 = vadd.f32 %v220, %v228
  %v231 = vtanh.pop %v230
  %233 = vrot.lane.b32.xlu0 %v231, 64
  %v234 = vpop.permute.xlu0 %233
  %v236 = vmul.f32 %v214, %v234
  %s237 = scalar_lea.vmem %s1, 1
  %v238 = vld [vmem:[%s237] sm:$0x1]
  %v239 = vsub.f32 %v230, %v218
  %v241 = vlaneseq
  %v242 = vshrl.u32 %v241, 7
  %v243 = vsub.s32 0, %v242
  %v244 = vrot.slane %v238, %v243
  %247 = vrot.lane.b32.xlu0 %v239, 96
  %v248 = vpop.permute.xlu0 %247
  %v250 = vmul.f32 %v244, %v248
  %v251 = vadd.f32 %v149, %v250
  %253 = vrot.lane.b32.xlu0 %v160, 96
  %v254 = vpop.permute.xlu0 %253
  %v256 = vsub.f32 %v236, %v254
  %258 = vrot.lane.b32.xlu0 %v256, 32
  %v259 = vpop.permute.xlu0 %258
  %v261 = vmul.f32 %v244, %v259
  %v262 = vadd.f32 %v160, %v261
  %s263 = scalar_lea.vmem %s0, 8
  %v264 = vld [vmem:[%s263] sm:$0xf]
  %v265 = vunpack.c.l.bf16 %v264
  %v266 = vpack.c.bf16 %v262, %v262
  %v268 = vsel %vm63, %v266, 0
  %270 = vmatprep.subr.bf16.mxu0 0
  %271 = vmatpush1.bf16.msra.mxu0 %v59
  %272 = vmatprep.subr.bf16.mxu0 0
  %273 = vmatpush1.bf16.msra.mxu0 %v60
  %274 = vmatprep.subr.bf16.mxu0 0
  %275 = vmatpush1.bf16.msra.mxu0 0
  %276 = vmatprep.subr.bf16.mxu0 0
  %277 = vmatpush1.bf16.msra.mxu0 0
  %278 = vmatprep.subr.bf16.mxu0 0
  %279 = vmatpush1.bf16.msra.mxu0 0
  %280 = vmatprep.subr.bf16.mxu0 0
  %281 = vmatpush1.bf16.msra.mxu0 0
  %282 = vmatprep.subr.bf16.mxu0 0
  %283 = vmatpush1.bf16.msra.mxu0 0
  %284 = vmatprep.subr.bf16.mxu0 0
  %285 = vmatpush1.bf16.msra.mxu0 0
  %286 = vmatprep.subr.bf16.mxu0 0
  %287 = vmatpush1.bf16.msra.mxu0 0
  %288 = vmatprep.subr.bf16.mxu0 0
  %289 = vmatpush1.bf16.msra.mxu0 0
  %290 = vmatprep.subr.bf16.mxu0 0
  %291 = vmatpush1.bf16.msra.mxu0 0
  %292 = vmatprep.subr.bf16.mxu0 0
  %293 = vmatpush1.bf16.msra.mxu0 0
  %294 = vmatprep.subr.bf16.mxu0 0
  %295 = vmatpush1.bf16.msra.mxu0 0
  %296 = vmatprep.subr.bf16.mxu0 0
  %297 = vmatpush1.bf16.msra.mxu0 0
  %298 = vmatprep.subr.bf16.mxu0 0
  %299 = vmatpush1.bf16.msra.mxu0 0
  %300 = vmatprep.subr.bf16.mxu0 0
  %301 = vmatpush1.bf16.msra.mxu0 0
  %302 = vmatprep.mubr.bf16.mxu0 0
  %303 = vmatmul.mubr.bf16.gmra.mrb[0].mxu0 %v268
  %v304 = vpop.f32.mrb[0].mxu0
  %v305 = vadd.f32 0.0, %v304
  %v306 = vpop.f32.mrb[0].mxu0
  %v307 = vpop.f32.mrb[0].mxu0
  %v308 = vpop.f32.mrb[0].mxu0
  %309 = vdwg.mxu0
  %v310 = vadd.f32 %v265, %v305
  %v311 = vxor.u32 %v310, 2147483648
  %v312 = vmul.f32 %v311, 1.442695
  %v313 = vpow.pop %v312
  %v314 = vadd.f32 %v313, 1.0
  %v315 = vrcp.pop %v314
  %v316 = vmul.f32 1.0, %v315
  %v317 = vtanh.pop %v310
  %319 = vrot.lane.b32.xlu0 %v251, 32
  %v320 = vpop.permute.xlu0 %319
  %v322 = vmul.f32 %v316, %v320
  %324 = vrot.lane.b32.xlu0 %v317, 64
  %v325 = vpop.permute.xlu0 %324
  %v327 = vmul.f32 %v316, %v325
  %329 = vrot.lane.b32.xlu0 %v327, 32
  %v330 = vpop.permute.xlu0 %329
  %v332 = vadd.f32 %v322, %v330
  %v333 = vtanh.pop %v332
  %335 = vrot.lane.b32.xlu0 %v333, 64
  %v336 = vpop.permute.xlu0 %335
  %v338 = vmul.f32 %v316, %v336
  %s339 = scalar_lea.vmem %s1, 2
  %v340 = vld [vmem:[%s339] sm:$0x1]
  %v341 = vsub.f32 %v332, %v320
  %v343 = vlaneseq
  %v344 = vshrl.u32 %v343, 7
  %v345 = vsub.s32 0, %v344
  %v346 = vrot.slane %v340, %v345
  %349 = vrot.lane.b32.xlu0 %v341, 96
  %v350 = vpop.permute.xlu0 %349
  %v352 = vmul.f32 %v346, %v350
  %v353 = vadd.f32 %v251, %v352
  %355 = vrot.lane.b32.xlu0 %v262, 96
  %v356 = vpop.permute.xlu0 %355
  %v358 = vsub.f32 %v338, %v356
  %360 = vrot.lane.b32.xlu0 %v358, 32
  %v361 = vpop.permute.xlu0 %360
  %v363 = vmul.f32 %v346, %v361
  %v364 = vadd.f32 %v262, %v363
  %s365 = scalar_lea.vmem %s0, 12
  %v366 = vld [vmem:[%s365] sm:$0xf]
  %v367 = vunpack.c.l.bf16 %v366
  %v368 = vpack.c.bf16 %v364, %v364
  %v370 = vsel %vm63, %v368, 0
  %372 = vmatprep.subr.bf16.mxu0 0
  %373 = vmatpush1.bf16.msra.mxu0 %v59
  %374 = vmatprep.subr.bf16.mxu0 0
  %375 = vmatpush1.bf16.msra.mxu0 %v60
  %376 = vmatprep.subr.bf16.mxu0 0
  %377 = vmatpush1.bf16.msra.mxu0 0
  %378 = vmatprep.subr.bf16.mxu0 0
  %379 = vmatpush1.bf16.msra.mxu0 0
  %380 = vmatprep.subr.bf16.mxu0 0
  %381 = vmatpush1.bf16.msra.mxu0 0
  %382 = vmatprep.subr.bf16.mxu0 0
  %383 = vmatpush1.bf16.msra.mxu0 0
  %384 = vmatprep.subr.bf16.mxu0 0
  %385 = vmatpush1.bf16.msra.mxu0 0
  %386 = vmatprep.subr.bf16.mxu0 0
  %387 = vmatpush1.bf16.msra.mxu0 0
  %388 = vmatprep.subr.bf16.mxu0 0
  %389 = vmatpush1.bf16.msra.mxu0 0
  %390 = vmatprep.subr.bf16.mxu0 0
  %391 = vmatpush1.bf16.msra.mxu0 0
  %392 = vmatprep.subr.bf16.mxu0 0
  %393 = vmatpush1.bf16.msra.mxu0 0
  %394 = vmatprep.subr.bf16.mxu0 0
  %395 = vmatpush1.bf16.msra.mxu0 0
  %396 = vmatprep.subr.bf16.mxu0 0
  %397 = vmatpush1.bf16.msra.mxu0 0
  %398 = vmatprep.subr.bf16.mxu0 0
  %399 = vmatpush1.bf16.msra.mxu0 0
  %400 = vmatprep.subr.bf16.mxu0 0
  %401 = vmatpush1.bf16.msra.mxu0 0
  %402 = vmatprep.subr.bf16.mxu0 0
  %403 = vmatpush1.bf16.msra.mxu0 0
  %404 = vmatprep.mubr.bf16.mxu0 0
  %405 = vmatmul.mubr.bf16.gmra.mrb[0].mxu0 %v370
  %v406 = vpop.f32.mrb[0].mxu0
  %v407 = vadd.f32 0.0, %v406
  %v408 = vpop.f32.mrb[0].mxu0
  %v409 = vpop.f32.mrb[0].mxu0
  %v410 = vpop.f32.mrb[0].mxu0
  %411 = vdwg.mxu0
  %v412 = vadd.f32 %v367, %v407
  %v413 = vxor.u32 %v412, 2147483648
  %v414 = vmul.f32 %v413, 1.442695
  %v415 = vpow.pop %v414
  %v416 = vadd.f32 %v415, 1.0
  %v417 = vrcp.pop %v416
  %v418 = vmul.f32 1.0, %v417
  %v419 = vtanh.pop %v412
  %421 = vrot.lane.b32.xlu0 %v353, 32
  %v422 = vpop.permute.xlu0 %421
  %v424 = vmul.f32 %v418, %v422
  %426 = vrot.lane.b32.xlu0 %v419, 64
  %v427 = vpop.permute.xlu0 %426
  %v429 = vmul.f32 %v418, %v427
  %431 = vrot.lane.b32.xlu0 %v429, 32
  %v432 = vpop.permute.xlu0 %431
  %v434 = vadd.f32 %v424, %v432
  %v435 = vtanh.pop %v434
  %437 = vrot.lane.b32.xlu0 %v435, 64
  %v438 = vpop.permute.xlu0 %437
  %v440 = vmul.f32 %v418, %v438
  %s441 = scalar_lea.vmem %s1, 3
  %v442 = vld [vmem:[%s441] sm:$0x1]
  %v443 = vsub.f32 %v434, %v422
  %v445 = vlaneseq
  %v446 = vshrl.u32 %v445, 7
  %v447 = vsub.s32 0, %v446
  %v448 = vrot.slane %v442, %v447
  %451 = vrot.lane.b32.xlu0 %v443, 96
  %v452 = vpop.permute.xlu0 %451
  %v454 = vmul.f32 %v448, %v452
  %v455 = vadd.f32 %v353, %v454
  %457 = vrot.lane.b32.xlu0 %v364, 96
  %v458 = vpop.permute.xlu0 %457
  %v460 = vsub.f32 %v440, %v458
  %462 = vrot.lane.b32.xlu0 %v460, 32
  %v463 = vpop.permute.xlu0 %462
  %v465 = vmul.f32 %v448, %v463
  %v466 = vadd.f32 %v364, %v465
  %s467 = scalar_lea.vmem %s0, 16
  %v468 = vld [vmem:[%s467] sm:$0xf]
  %v469 = vunpack.c.l.bf16 %v468
  %v470 = vpack.c.bf16 %v466, %v466
  %v472 = vsel %vm63, %v470, 0
  %474 = vmatprep.subr.bf16.mxu0 0
  %475 = vmatpush1.bf16.msra.mxu0 %v59
  %476 = vmatprep.subr.bf16.mxu0 0
  %477 = vmatpush1.bf16.msra.mxu0 %v60
  %478 = vmatprep.subr.bf16.mxu0 0
  %479 = vmatpush1.bf16.msra.mxu0 0
  %480 = vmatprep.subr.bf16.mxu0 0
  %481 = vmatpush1.bf16.msra.mxu0 0
  %482 = vmatprep.subr.bf16.mxu0 0
  %483 = vmatpush1.bf16.msra.mxu0 0
  %484 = vmatprep.subr.bf16.mxu0 0
  %485 = vmatpush1.bf16.msra.mxu0 0
  %486 = vmatprep.subr.bf16.mxu0 0
  %487 = vmatpush1.bf16.msra.mxu0 0
  %488 = vmatprep.subr.bf16.mxu0 0
  %489 = vmatpush1.bf16.msra.mxu0 0
  %490 = vmatprep.subr.bf16.mxu0 0
  %491 = vmatpush1.bf16.msra.mxu0 0
  %492 = vmatprep.subr.bf16.mxu0 0
  %493 = vmatpush1.bf16.msra.mxu0 0
  %494 = vmatprep.subr.bf16.mxu0 0
  %495 = vmatpush1.bf16.msra.mxu0 0
  %496 = vmatprep.subr.bf16.mxu0 0
  %497 = vmatpush1.bf16.msra.mxu0 0
  %498 = vmatprep.subr.bf16.mxu0 0
  %499 = vmatpush1.bf16.msra.mxu0 0
  %500 = vmatprep.subr.bf16.mxu0 0
  %501 = vmatpush1.bf16.msra.mxu0 0
  %502 = vmatprep.subr.bf16.mxu0 0
  %503 = vmatpush1.bf16.msra.mxu0 0
  %504 = vmatprep.subr.bf16.mxu0 0
  %505 = vmatpush1.bf16.msra.mxu0 0
  %506 = vmatprep.mubr.bf16.mxu0 0
  %507 = vmatmul.mubr.bf16.gmra.mrb[0].mxu0 %v472
  %v508 = vpop.f32.mrb[0].mxu0
  %v509 = vadd.f32 0.0, %v508
  %v510 = vpop.f32.mrb[0].mxu0
  %v511 = vpop.f32.mrb[0].mxu0
  %v512 = vpop.f32.mrb[0].mxu0
  %513 = vdwg.mxu0
  %v514 = vadd.f32 %v469, %v509
  %v515 = vxor.u32 %v514, 2147483648
  %v516 = vmul.f32 %v515, 1.442695
  %v517 = vpow.pop %v516
  %v518 = vadd.f32 %v517, 1.0
  %v519 = vrcp.pop %v518
  %v520 = vmul.f32 1.0, %v519
  %v521 = vtanh.pop %v514
  %523 = vrot.lane.b32.xlu0 %v455, 32
  %v524 = vpop.permute.xlu0 %523
  %v526 = vmul.f32 %v520, %v524
  %528 = vrot.lane.b32.xlu0 %v521, 64
  %v529 = vpop.permute.xlu0 %528
  %v531 = vmul.f32 %v520, %v529
  %533 = vrot.lane.b32.xlu0 %v531, 32
  %v534 = vpop.permute.xlu0 %533
  %v536 = vadd.f32 %v526, %v534
  %v537 = vtanh.pop %v536
  %539 = vrot.lane.b32.xlu0 %v537, 64
  %v540 = vpop.permute.xlu0 %539
  %v542 = vmul.f32 %v520, %v540
  %s543 = scalar_lea.vmem %s1, 4
  %v544 = vld [vmem:[%s543] sm:$0x1]
  %v545 = vsub.f32 %v536, %v524
  %v547 = vlaneseq
  %v548 = vshrl.u32 %v547, 7
  %v549 = vsub.s32 0, %v548
  %v550 = vrot.slane %v544, %v549
  %553 = vrot.lane.b32.xlu0 %v545, 96
  %v554 = vpop.permute.xlu0 %553
  %v556 = vmul.f32 %v550, %v554
  %v557 = vadd.f32 %v455, %v556
  %559 = vrot.lane.b32.xlu0 %v466, 96
  %v560 = vpop.permute.xlu0 %559
  %v562 = vsub.f32 %v542, %v560
  %564 = vrot.lane.b32.xlu0 %v562, 32
  %v565 = vpop.permute.xlu0 %564
  %v567 = vmul.f32 %v550, %v565
  %v568 = vadd.f32 %v466, %v567
  %s569 = scalar_lea.vmem %s0, 20
  %v570 = vld [vmem:[%s569] sm:$0xf]
  %v571 = vunpack.c.l.bf16 %v570
  %v572 = vpack.c.bf16 %v568, %v568
  %v574 = vsel %vm63, %v572, 0
  %576 = vmatprep.subr.bf16.mxu0 0
  %577 = vmatpush1.bf16.msra.mxu0 %v59
  %578 = vmatprep.subr.bf16.mxu0 0
  %579 = vmatpush1.bf16.msra.mxu0 %v60
  %580 = vmatprep.subr.bf16.mxu0 0
  %581 = vmatpush1.bf16.msra.mxu0 0
  %582 = vmatprep.subr.bf16.mxu0 0
  %583 = vmatpush1.bf16.msra.mxu0 0
  %584 = vmatprep.subr.bf16.mxu0 0
  %585 = vmatpush1.bf16.msra.mxu0 0
  %586 = vmatprep.subr.bf16.mxu0 0
  %587 = vmatpush1.bf16.msra.mxu0 0
  %588 = vmatprep.subr.bf16.mxu0 0
  %589 = vmatpush1.bf16.msra.mxu0 0
  %590 = vmatprep.subr.bf16.mxu0 0
  %591 = vmatpush1.bf16.msra.mxu0 0
  %592 = vmatprep.subr.bf16.mxu0 0
  %593 = vmatpush1.bf16.msra.mxu0 0
  %594 = vmatprep.subr.bf16.mxu0 0
  %595 = vmatpush1.bf16.msra.mxu0 0
  %596 = vmatprep.subr.bf16.mxu0 0
  %597 = vmatpush1.bf16.msra.mxu0 0
  %598 = vmatprep.subr.bf16.mxu0 0
  %599 = vmatpush1.bf16.msra.mxu0 0
  %600 = vmatprep.subr.bf16.mxu0 0
  %601 = vmatpush1.bf16.msra.mxu0 0
  %602 = vmatprep.subr.bf16.mxu0 0
  %603 = vmatpush1.bf16.msra.mxu0 0
  %604 = vmatprep.subr.bf16.mxu0 0
  %605 = vmatpush1.bf16.msra.mxu0 0
  %606 = vmatprep.subr.bf16.mxu0 0
  %607 = vmatpush1.bf16.msra.mxu0 0
  %608 = vmatprep.mubr.bf16.mxu0 0
  %609 = vmatmul.mubr.bf16.gmra.mrb[0].mxu0 %v574
  %v610 = vpop.f32.mrb[0].mxu0
  %v611 = vadd.f32 0.0, %v610
  %v612 = vpop.f32.mrb[0].mxu0
  %v613 = vpop.f32.mrb[0].mxu0
  %v614 = vpop.f32.mrb[0].mxu0
  %615 = vdwg.mxu0
  %v616 = vadd.f32 %v571, %v611
  %v617 = vxor.u32 %v616, 2147483648
  %v618 = vmul.f32 %v617, 1.442695
  %v619 = vpow.pop %v618
  %v620 = vadd.f32 %v619, 1.0
  %v621 = vrcp.pop %v620
  %v622 = vmul.f32 1.0, %v621
  %v623 = vtanh.pop %v616
  %625 = vrot.lane.b32.xlu0 %v557, 32
  %v626 = vpop.permute.xlu0 %625
  %v628 = vmul.f32 %v622, %v626
  %630 = vrot.lane.b32.xlu0 %v623, 64
  %v631 = vpop.permute.xlu0 %630
  %v633 = vmul.f32 %v622, %v631
  %635 = vrot.lane.b32.xlu0 %v633, 32
  %v636 = vpop.permute.xlu0 %635
  %v638 = vadd.f32 %v628, %v636
  %v639 = vtanh.pop %v638
  %641 = vrot.lane.b32.xlu0 %v639, 64
  %v642 = vpop.permute.xlu0 %641
  %v644 = vmul.f32 %v622, %v642
  %s645 = scalar_lea.vmem %s1, 5
  %v646 = vld [vmem:[%s645] sm:$0x1]
  %v647 = vsub.f32 %v638, %v626
  %v649 = vlaneseq
  %v650 = vshrl.u32 %v649, 7
  %v651 = vsub.s32 0, %v650
  %v652 = vrot.slane %v646, %v651
  %655 = vrot.lane.b32.xlu0 %v647, 96
  %v656 = vpop.permute.xlu0 %655
  %v658 = vmul.f32 %v652, %v656
  %v659 = vadd.f32 %v557, %v658
  %661 = vrot.lane.b32.xlu0 %v568, 96
  %v662 = vpop.permute.xlu0 %661
  %v664 = vsub.f32 %v644, %v662
  %666 = vrot.lane.b32.xlu0 %v664, 32
  %v667 = vpop.permute.xlu0 %666
  %v669 = vmul.f32 %v652, %v667
  %v670 = vadd.f32 %v568, %v669
  %s671 = scalar_lea.vmem %s0, 24
  %v672 = vld [vmem:[%s671] sm:$0xf]
  %v673 = vunpack.c.l.bf16 %v672
  %v674 = vpack.c.bf16 %v670, %v670
  %v676 = vsel %vm63, %v674, 0
  %678 = vmatprep.subr.bf16.mxu0 0
  %679 = vmatpush1.bf16.msra.mxu0 %v59
  %680 = vmatprep.subr.bf16.mxu0 0
  %681 = vmatpush1.bf16.msra.mxu0 %v60
  %682 = vmatprep.subr.bf16.mxu0 0
  %683 = vmatpush1.bf16.msra.mxu0 0
  %684 = vmatprep.subr.bf16.mxu0 0
  %685 = vmatpush1.bf16.msra.mxu0 0
  %686 = vmatprep.subr.bf16.mxu0 0
  %687 = vmatpush1.bf16.msra.mxu0 0
  %688 = vmatprep.subr.bf16.mxu0 0
  %689 = vmatpush1.bf16.msra.mxu0 0
  %690 = vmatprep.subr.bf16.mxu0 0
  %691 = vmatpush1.bf16.msra.mxu0 0
  %692 = vmatprep.subr.bf16.mxu0 0
  %693 = vmatpush1.bf16.msra.mxu0 0
  %694 = vmatprep.subr.bf16.mxu0 0
  %695 = vmatpush1.bf16.msra.mxu0 0
  %696 = vmatprep.subr.bf16.mxu0 0
  %697 = vmatpush1.bf16.msra.mxu0 0
  %698 = vmatprep.subr.bf16.mxu0 0
  %699 = vmatpush1.bf16.msra.mxu0 0
  %700 = vmatprep.subr.bf16.mxu0 0
  %701 = vmatpush1.bf16.msra.mxu0 0
  %702 = vmatprep.subr.bf16.mxu0 0
  %703 = vmatpush1.bf16.msra.mxu0 0
  %704 = vmatprep.subr.bf16.mxu0 0
  %705 = vmatpush1.bf16.msra.mxu0 0
  %706 = vmatprep.subr.bf16.mxu0 0
  %707 = vmatpush1.bf16.msra.mxu0 0
  %708 = vmatprep.subr.bf16.mxu0 0
  %709 = vmatpush1.bf16.msra.mxu0 0
  %710 = vmatprep.mubr.bf16.mxu0 0
  %711 = vmatmul.mubr.bf16.gmra.mrb[0].mxu0 %v676
  %v712 = vpop.f32.mrb[0].mxu0
  %v713 = vadd.f32 0.0, %v712
  %v714 = vpop.f32.mrb[0].mxu0
  %v715 = vpop.f32.mrb[0].mxu0
  %v716 = vpop.f32.mrb[0].mxu0
  %717 = vdwg.mxu0
  %v718 = vadd.f32 %v673, %v713
  %v719 = vxor.u32 %v718, 2147483648
  %v720 = vmul.f32 %v719, 1.442695
  %v721 = vpow.pop %v720
  %v722 = vadd.f32 %v721, 1.0
  %v723 = vrcp.pop %v722
  %v724 = vmul.f32 1.0, %v723
  %v725 = vtanh.pop %v718
  %727 = vrot.lane.b32.xlu0 %v659, 32
  %v728 = vpop.permute.xlu0 %727
  %v730 = vmul.f32 %v724, %v728
  %732 = vrot.lane.b32.xlu0 %v725, 64
  %v733 = vpop.permute.xlu0 %732
  %v735 = vmul.f32 %v724, %v733
  %737 = vrot.lane.b32.xlu0 %v735, 32
  %v738 = vpop.permute.xlu0 %737
  %v740 = vadd.f32 %v730, %v738
  %v741 = vtanh.pop %v740
  %743 = vrot.lane.b32.xlu0 %v741, 64
  %v744 = vpop.permute.xlu0 %743
  %v746 = vmul.f32 %v724, %v744
  %s747 = scalar_lea.vmem %s1, 6
  %v748 = vld [vmem:[%s747] sm:$0x1]
  %v749 = vsub.f32 %v740, %v728
  %v751 = vlaneseq
  %v752 = vshrl.u32 %v751, 7
  %v753 = vsub.s32 0, %v752
  %v754 = vrot.slane %v748, %v753
  %757 = vrot.lane.b32.xlu0 %v749, 96
  %v758 = vpop.permute.xlu0 %757
  %v760 = vmul.f32 %v754, %v758
  %v761 = vadd.f32 %v659, %v760
  %763 = vrot.lane.b32.xlu0 %v670, 96
  %v764 = vpop.permute.xlu0 %763
  %v766 = vsub.f32 %v746, %v764
  %768 = vrot.lane.b32.xlu0 %v766, 32
  %v769 = vpop.permute.xlu0 %768
  %v771 = vmul.f32 %v754, %v769
  %v772 = vadd.f32 %v670, %v771
  %s773 = scalar_lea.vmem %s0, 28
  %v774 = vld [vmem:[%s773] sm:$0xf]
  %v775 = vunpack.c.l.bf16 %v774
  %v776 = vpack.c.bf16 %v772, %v772
  %v778 = vsel %vm63, %v776, 0
  %780 = vmatprep.subr.bf16.mxu0 0
  %781 = vmatpush1.bf16.msra.mxu0 %v59
  %782 = vmatprep.subr.bf16.mxu0 0
  %783 = vmatpush1.bf16.msra.mxu0 %v60
  %784 = vmatprep.subr.bf16.mxu0 0
  %785 = vmatpush1.bf16.msra.mxu0 0
  %786 = vmatprep.subr.bf16.mxu0 0
  %787 = vmatpush1.bf16.msra.mxu0 0
  %788 = vmatprep.subr.bf16.mxu0 0
  %789 = vmatpush1.bf16.msra.mxu0 0
  %790 = vmatprep.subr.bf16.mxu0 0
  %791 = vmatpush1.bf16.msra.mxu0 0
  %792 = vmatprep.subr.bf16.mxu0 0
  %793 = vmatpush1.bf16.msra.mxu0 0
  %794 = vmatprep.subr.bf16.mxu0 0
  %795 = vmatpush1.bf16.msra.mxu0 0
  %796 = vmatprep.subr.bf16.mxu0 0
  %797 = vmatpush1.bf16.msra.mxu0 0
  %798 = vmatprep.subr.bf16.mxu0 0
  %799 = vmatpush1.bf16.msra.mxu0 0
  %800 = vmatprep.subr.bf16.mxu0 0
  %801 = vmatpush1.bf16.msra.mxu0 0
  %802 = vmatprep.subr.bf16.mxu0 0
  %803 = vmatpush1.bf16.msra.mxu0 0
  %804 = vmatprep.subr.bf16.mxu0 0
  %805 = vmatpush1.bf16.msra.mxu0 0
  %806 = vmatprep.subr.bf16.mxu0 0
  %807 = vmatpush1.bf16.msra.mxu0 0
  %808 = vmatprep.subr.bf16.mxu0 0
  %809 = vmatpush1.bf16.msra.mxu0 0
  %810 = vmatprep.subr.bf16.mxu0 0
  %811 = vmatpush1.bf16.msra.mxu0 0
  %812 = vmatprep.mubr.bf16.mxu0 0
  %813 = vmatmul.mubr.bf16.gmra.mrb[0].mxu0 %v778
  %v814 = vpop.f32.mrb[0].mxu0
  %v815 = vadd.f32 0.0, %v814
  %v816 = vpop.f32.mrb[0].mxu0
  %v817 = vpop.f32.mrb[0].mxu0
  %v818 = vpop.f32.mrb[0].mxu0
  %819 = vdwg.mxu0
  %v820 = vadd.f32 %v775, %v815
  %v821 = vxor.u32 %v820, 2147483648
  %v822 = vmul.f32 %v821, 1.442695
  %v823 = vpow.pop %v822
  %v824 = vadd.f32 %v823, 1.0
  %v825 = vrcp.pop %v824
  %v826 = vmul.f32 1.0, %v825
  %v827 = vtanh.pop %v820
  %829 = vrot.lane.b32.xlu0 %v761, 32
  %v830 = vpop.permute.xlu0 %829
  %v832 = vmul.f32 %v826, %v830
  %834 = vrot.lane.b32.xlu0 %v827, 64
  %v835 = vpop.permute.xlu0 %834
  %v837 = vmul.f32 %v826, %v835
  %839 = vrot.lane.b32.xlu0 %v837, 32
  %v840 = vpop.permute.xlu0 %839
  %v842 = vadd.f32 %v832, %v840
  %v843 = vtanh.pop %v842
  %845 = vrot.lane.b32.xlu0 %v843, 64
  %v846 = vpop.permute.xlu0 %845
  %v848 = vmul.f32 %v826, %v846
  %s849 = scalar_lea.vmem %s1, 7
  %v850 = vld [vmem:[%s849] sm:$0x1]
  %v851 = vsub.f32 %v842, %v830
  %v853 = vlaneseq
  %v854 = vshrl.u32 %v853, 7
  %v855 = vsub.s32 0, %v854
  %v856 = vrot.slane %v850, %v855
  %859 = vrot.lane.b32.xlu0 %v851, 96
  %v860 = vpop.permute.xlu0 %859
  %v862 = vmul.f32 %v856, %v860
  %v863 = vadd.f32 %v761, %v862
  %865 = vrot.lane.b32.xlu0 %v772, 96
  %v866 = vpop.permute.xlu0 %865
  %v868 = vsub.f32 %v848, %v866
  %870 = vrot.lane.b32.xlu0 %v868, 32
  %v871 = vpop.permute.xlu0 %870
  %v873 = vmul.f32 %v856, %v871
  %v874 = vadd.f32 %v772, %v873
  %875 = vst.msk [vmem:[#allocation2] sm:$0xff] %vm63, %v874
  %876 = vst.msk [vmem:[#allocation3] sm:$0xff] %vm63, %v863
  // Predicated region
  $region42: #{phased_lstm_forward.1} parent=0 // pred_check
    %p877 = pneg %p35
  $region43: #{phased_lstm_forward.1} parent=0 // pred_check_branch
    %879 = sbr.rel (%p877) target = $region45
  $region44: #{phased_lstm_forward.1} parent=0 // pred_region
    %v880 = vsel %vm63, %v874, 0.0
    %881 = vadd.xlane.f32.xlu0 %v880
    %v882 = vpop.xlane.xlu0 %881
    %v883 = vrcp.pop 32.0
    %v884 = vmul.f32 %v882, %v883
    %v885 = vsub.f32 %v874, %v884
    %v886 = vmul.f32 %v885, %v885
    %v887 = vsel %vm63, %v886, 0.0
    %888 = vadd.xlane.f32.xlu0 %v887
    %v889 = vpop.xlane.xlu0 %888
    %v890 = vmul.f32 %v889, %v883
    %v891 = vadd.f32 %v890, 1e-05
    %v892 = vrsqrt.pop %v891
    %v893 = vmul.f32 %v885, %v892
    %v894 = vld [vmem:[%s3] sm:$0x1]
    %v896 = vlaneseq
    %v897 = vshrl.u32 %v896, 7
    %v898 = vsub.s32 0, %v897
    %v899 = vrot.slane %v894, %v898
    %v901 = vmul.f32 %v893, %v899
    %v902 = vld [vmem:[%s4] sm:$0x1]
    %v904 = vlaneseq
    %v905 = vshrl.u32 %v904, 7
    %v906 = vsub.s32 0, %v905
    %v907 = vrot.slane %v902, %v906
    %v909 = vadd.f32 %v901, %v907
    %v910 = vpack.c.bf16 %v909, %v909
    %v911 = vld [vmem:[%s5] sm:$0xf]
    %v912 = vld [vmem:[%s5 + $0x4] sm:$0xf]
    %v913 = vld [vmem:[%s5 + $0x8] sm:$0xf]
    %v914 = vld [vmem:[%s5 + $0xc] sm:$0xf]
    %v915 = vld [vmem:[%s6] sm:$0x1]
    %v917 = vlaneseq
    %v918 = vshrl.u32 %v917, 7
    %v919 = vsub.s32 0, %v918
    %v920 = vrot.slane %v915, %v919
    %v926 = vunpack.c.l.b16 %v911
    %v927 = vunpack.c.l.b16 %v912
    %v928 = vunpack.c.l.b16 %v913
    %v929 = vunpack.c.l.b16 %v914
    %v930 = vpack.c.b16 %v927, %v926
    %v931 = vpack.c.b16 %v929, %v928
    %v935 = vsel %vm63, %v910, 0
    %937 = vmatprep.subr.bf16.mxu0 0
    %938 = vmatpush1.bf16.msra.mxu0 %v930
    %939 = vmatprep.subr.bf16.mxu0 0
    %940 = vmatpush1.bf16.msra.mxu0 %v931
    %941 = vmatprep.subr.bf16.mxu0 0
    %942 = vmatpush1.bf16.msra.mxu0 0
    %943 = vmatprep.subr.bf16.mxu0 0
    %944 = vmatpush1.bf16.msra.mxu0 0
    %945 = vmatprep.subr.bf16.mxu0 0
    %946 = vmatpush1.bf16.msra.mxu0 0
    %947 = vmatprep.subr.bf16.mxu0 0
    %948 = vmatpush1.bf16.msra.mxu0 0
    %949 = vmatprep.subr.bf16.mxu0 0
    %950 = vmatpush1.bf16.msra.mxu0 0
    %951 = vmatprep.subr.bf16.mxu0 0
    %952 = vmatpush1.bf16.msra.mxu0 0
    %953 = vmatprep.subr.bf16.mxu0 0
    %954 = vmatpush1.bf16.msra.mxu0 0
    %955 = vmatprep.subr.bf16.mxu0 0
    %956 = vmatpush1.bf16.msra.mxu0 0
    %957 = vmatprep.subr.bf16.mxu0 0
    %958 = vmatpush1.bf16.msra.mxu0 0
    %959 = vmatprep.subr.bf16.mxu0 0
    %960 = vmatpush1.bf16.msra.mxu0 0
    %961 = vmatprep.subr.bf16.mxu0 0
    %962 = vmatpush1.bf16.msra.mxu0 0
    %963 = vmatprep.subr.bf16.mxu0 0
    %964 = vmatpush1.bf16.msra.mxu0 0
    %965 = vmatprep.subr.bf16.mxu0 0
    %966 = vmatpush1.bf16.msra.mxu0 0
    %967 = vmatprep.subr.bf16.mxu0 0
    %968 = vmatpush1.bf16.msra.mxu0 0
    %969 = vmatprep.mubr.bf16.mxu0 0
    %970 = vmatmul.mubr.bf16.gmra.mrb[0].mxu0 %v935
    %v971 = vpop.f32.mrb[0].mxu0
    %v972 = vadd.f32 %v920, %v971
    %v973 = vpop.f32.mrb[0].mxu0
    %v974 = vpop.f32.mrb[0].mxu0
    %v975 = vpop.f32.mrb[0].mxu0
    %976 = vdwg.mxu0
    %v977 = vld [vmem:[%s7] sm:$0x1]
    %v979 = vlaneseq
    %v980 = vshrl.u32 %v979, 7
    %v981 = vsub.s32 0, %v980
    %v982 = vrot.slane %v977, %v981
    %v984 = vmul.f32 %v972, %v982
    %vm985 = vcmask 130048
    %v986 = vsel %vm985, %v984, 0.0
    %987 = vadd.xlane.f32.xlu0 %v986
    %v988 = vpop.xlane.xlu0 %987
    %v989 = vld [vmem:[#allocation4] sm:$0x1]
    %v991 = vlaneseq
    %v992 = vshrl.u32 %v991, 7
    %v993 = vsub.s32 0, %v992
    %v994 = vrot.slane %v989, %v993
    %v996 = vadd.f32 %v988, %v994
    %vm997 = vcmask 7168
    %998 = vst.msk [vmem:[%s9] sm:$0xff] %vm997, %v996
  $region45: #{phased_lstm_forward.1} parent=0 // pred_fallthru
    _
  // Predicated region
  $region46: #{phased_lstm_forward.1} parent=0 // pred_check
    _
  $region47: #{phased_lstm_forward.1} parent=0 // pred_check_branch
    %1000 = sbr.rel (0) target = $region49
  $region48: #{phased_lstm_forward.1} parent=0 // pred_region
    _
  $region49: #{phased_lstm_forward.1} parent=0 // pred_fallthru
    _
  // Predicated region
  $region50: #{phased_lstm_forward.1} parent=0 // pred_check
    _
  $region51: #{phased_lstm_forward.1} parent=0 // pred_check_branch
    %1002 = sbr.rel (0) target = $region53
  $region52: #{phased_lstm_forward.1} parent=0 // pred_region
    _
  $region53: #{phased_lstm_forward.1} parent=0 // pred_fallthru
    _

</llo_original>
